<compile_context>
chip_gen: v5e
topology: v5e:2x2
jax: 0.10.0
libtpu: 0.0.40
codegen_flags: <defaults>
</compile_context>

<pallas_src>
import functools

import jax
import jax.numpy as jnp
from jax.experimental import pallas as pl
from jax.experimental.pallas import tpu as pltpu


def _round_up(n, m):
    return ((n + m - 1) // m) * m


def _pad_to(a, shape):
    return jnp.pad(a, [(0, s - d) for d, s in zip(a.shape, shape)])


def _fused_rnn_kernel(x_ref, h0_ref, b0_ref, b_ref,
                      wx0_hbm, wx_hbm, wh_hbm,
                      y_ref, hN_ref,
                      wx0_v, wx_v, wh_v, ybuf, dma_sem,
                      *, seq_len):
    """One time block (t_blk steps) across ALL layers.

    Grid axis 0 = time block (sequential, 'arbitrary').
      x_ref   : (t_blk, B, Din) raw input block, time-major
      h0_ref  : (L, B, H)       initial hidden states (read at block 0)
      b0_ref  : (1, H)          layer-0 bias
      b_ref   : (max(L-1,1),1,H) biases for layers 1..L-1
      wx0_hbm : (Din, H)  bf16, HBM (staged once into wx0_v)
      wx_hbm  : (max(L-1,1),H,H) bf16, HBM (staged once into wx_v)
      wh_hbm  : (L, H, H) bf16, HBM (staged once into wh_v)
      y_ref   : (t_blk, B, H)   last-layer outputs for this block
      hN_ref  : (L, B, H)       final hidden states; resident accumulator that
                                carries the per-layer state across blocks
      wx0_v/wx_v/wh_v : VMEM scratch, single-buffered resident weights
      ybuf    : VMEM (t_blk, B, H) inter-layer / preactivation block buffer
      dma_sem : DMA semaphores for the one-time weight staging
    """
    t_blk, b_pad, din_pad = x_ref.shape
    num_layers, _, h_pad = h0_ref.shape
    n_blk = -(-seq_len // t_blk)                 # static
    tail = seq_len - (n_blk - 1) * t_blk         # static valid steps, last block
    tb = pl.program_id(0)

    @pl.when(tb == 0)
    def _():
        # One-time: stage bf16 weights into single-buffered VMEM (resident for
        # the whole grid) and seed the carried hidden-state accumulator.
        cp0 = pltpu.make_async_copy(wx0_hbm, wx0_v, dma_sem.at[0])
        cp1 = pltpu.make_async_copy(wx_hbm, wx_v, dma_sem.at[1])
        cp2 = pltpu.make_async_copy(wh_hbm, wh_v, dma_sem.at[2])
        cp0.start(); cp1.start(); cp2.start()
        cp0.wait(); cp1.wait(); cp2.wait()
        hN_ref[...] = h0_ref[...]

    def recur(l, dst, wh_l, n_steps):
        # Serial recurrence: per step one (B,H)@(H,H) bf16 MXU pass + add+tanh.
        h = hN_ref[l]
        for tt in range(n_steps):
            h = jnp.tanh(
                jnp.dot(h.astype(jnp.bfloat16), wh_l,
                        preferred_element_type=jnp.float32)
                + ybuf[tt])
            dst[tt] = h
        hN_ref[l] = h

    for l in range(num_layers):
        last_layer = l == num_layers - 1

        # Block input projection: one MXU matmul over the whole time block,
        # bias folded in once.  Layer 0 consumes the raw x block directly.
        if l == 0:
            lhs = x_ref[...].reshape(t_blk * b_pad, din_pad)
            wxl, bl = wx0_v[...], b0_ref[...]
        else:
            lhs = ybuf[...].reshape(t_blk * b_pad, h_pad)
            wxl, bl = wx_v[l - 1], b_ref[l - 1]
        zin = jnp.dot(lhs.astype(jnp.bfloat16), wxl,
                      preferred_element_type=jnp.float32) + bl
        ybuf[...] = zin.reshape(t_blk, b_pad, h_pad)

        # Last layer writes straight to the HBM-bound output block.
        dst = y_ref if last_layer else ybuf
        wh_l = wh_v[l]                           # hoisted out of the time loop

        if tail == t_blk:
            recur(l, dst, wh_l, t_blk)
        else:
            # Tail handling off the hot path: full blocks run the plain loop;
            # only the final partial block uses a shorter static trip count,
            # so padded timesteps never advance the carried state.
            @pl.when(tb < n_blk - 1)
            def _():
                recur(l, dst, wh_l, t_blk)

            @pl.when(tb == n_blk - 1)
            def _():
                recur(l, dst, wh_l, tail)


def init_rnn_params(key, input_size, hidden_size, num_layers):
    """Deterministic params mirroring nn.Linear(in+H, H) per layer.

    PyTorch Linear init: U(-1/sqrt(fan_in), 1/sqrt(fan_in)).
    Weight is stored pre-transposed and split into (wx, wh).
    """
    params = []
    for l in range(num_layers):
        d_in = input_size if l == 0 else hidden_size
        fan_in = d_in + hidden_size
        bound = 1.0 / jnp.sqrt(jnp.float32(fan_in))
        key, kw, kb = jax.random.split(key, 3)
        w = jax.random.uniform(kw, (fan_in, hidden_size),
                               minval=-bound, maxval=bound, dtype=jnp.float32)
        b = jax.random.uniform(kb, (1, hidden_size),
                               minval=-bound, maxval=bound, dtype=jnp.float32)
        params.append({"wx": w[:d_in], "wh": w[d_in:], "b": b})
    return params


@functools.partial(jax.jit, static_argnames=("t_blk",))
def rnn_forward(x, h, params, *, t_blk=32):
    """RNN.forward.

    x : (B, S, input_size)
    h : (B, L, H) or None
    returns y (B, S, H), h_out (B, L, H)
    """
    B, S, Din = x.shape
    L = len(params)
    H = params[0]["wh"].shape[0]

    if h is None:
        h = jnp.zeros((B, L, H), dtype=jnp.float32)

    x = x.astype(jnp.float32)
    h = h.astype(jnp.float32)

    # Hardware-aligned padding: 8 sublanes (batch), 128 lanes (hidden / input).
    B_pad = _round_up(B, 8)
    H_pad = _round_up(H, 128)
    Din_pad = _round_up(Din, 128)
    t_blk = max(1, min(t_blk, S))
    n_blk = (S + t_blk - 1) // t_blk
    S_pad = n_blk * t_blk

    # Time-major, zero-padded raw input (layer-0 projection happens in-kernel).
    x_tm = _pad_to(jnp.transpose(x, (1, 0, 2)), (S_pad, B_pad, Din_pad))

    # Weights stored bf16 (staged once into VMEM inside the kernel);
    # biases / states stay f32.  No dummy layer-0 slot in wx/b stacks.
    wx0 = _pad_to(params[0]["wx"], (Din_pad, H_pad)).astype(jnp.bfloat16)
    b0 = _pad_to(params[0]["b"], (1, H_pad))
    wh_all = jnp.stack(
        [_pad_to(p["wh"], (H_pad, H_pad)) for p in params]).astype(jnp.bfloat16)
    if L > 1:
        wx_all = jnp.stack(
            [_pad_to(p["wx"], (H_pad, H_pad)) for p in params[1:]]).astype(jnp.bfloat16)
        b_all = jnp.stack([_pad_to(p["b"], (1, H_pad)) for p in params[1:]])
    else:   # single-layer: tiny unused placeholders keep the signature static
        wx_all = jnp.zeros((1, H_pad, H_pad), jnp.bfloat16)
        b_all = jnp.zeros((1, 1, H_pad), jnp.float32)
    h0_all = _pad_to(jnp.transpose(h, (1, 0, 2)), (L, B_pad, H_pad))

    # Explicit VMEM budget for the fused resident-weight design.
    f32b, bf16b = 4, 2
    vmem_need = (
        2 * t_blk * B_pad * Din_pad * f32b                 # x blocks (double-buffered)
        + 2 * t_blk * B_pad * H_pad * f32b                 # y blocks (double-buffered)
        + 2 * 2 * L * B_pad * H_pad * f32b                 # h0 input + hN output
        + 2 * (1 + max(L - 1, 1)) * H_pad * f32b           # biases
        + (Din_pad + (L + max(L - 1, 1)) * H_pad) * H_pad * bf16b  # staged weights (1x)
        + t_blk * B_pad * H_pad * f32b                     # ybuf scratch
    )
    vmem_limit = max(32 << 20, min(int(1.5 * vmem_need) + (4 << 20), 64 << 20))

    grid_spec = pltpu.PrefetchScalarGridSpec(
        num_scalar_prefetch=0,
        grid=(n_blk,),
        in_specs=[
            pl.BlockSpec((t_blk, B_pad, Din_pad), lambda tb: (tb, 0, 0)),   # x block
            pl.BlockSpec((L, B_pad, H_pad), lambda tb: (0, 0, 0)),          # h0 (resident)
            pl.BlockSpec((1, H_pad), lambda tb: (0, 0)),                    # b0 (resident)
            pl.BlockSpec((max(L - 1, 1), 1, H_pad), lambda tb: (0, 0, 0)),  # biases 1..L-1
            pl.BlockSpec(memory_space=pl.ANY),                              # wx0 (HBM)
            pl.BlockSpec(memory_space=pl.ANY),                              # wx  (HBM)
            pl.BlockSpec(memory_space=pl.ANY),                              # wh  (HBM)
        ],
        out_specs=[
            pl.BlockSpec((t_blk, B_pad, H_pad), lambda tb: (tb, 0, 0)),     # y block
            pl.BlockSpec((L, B_pad, H_pad), lambda tb: (0, 0, 0)),          # hN (resident acc)
        ],
        scratch_shapes=[
            pltpu.VMEM((Din_pad, H_pad), jnp.bfloat16),                 # wx0 staged
            pltpu.VMEM((max(L - 1, 1), H_pad, H_pad), jnp.bfloat16),    # wx staged
            pltpu.VMEM((L, H_pad, H_pad), jnp.bfloat16),                # wh staged
            pltpu.VMEM((t_blk, B_pad, H_pad), jnp.float32),             # inter-layer buf
            pltpu.SemaphoreType.DMA((3,)),                              # weight-staging DMAs
        ],
    )

    y_tm, h_last = pl.pallas_call(
        functools.partial(_fused_rnn_kernel, seq_len=S),
        grid_spec=grid_spec,
        out_shape=(
            jax.ShapeDtypeStruct((S_pad, B_pad, H_pad), jnp.float32),
            jax.ShapeDtypeStruct((L, B_pad, H_pad), jnp.float32),
        ),
        compiler_params=pltpu.CompilerParams(
            dimension_semantics=("arbitrary",),   # recurrence: sequential in time
            vmem_limit_bytes=vmem_limit,
        ),
    )(x_tm, h0_all, b0, b_all, wx0, wx_all, wh_all)

    y = jnp.transpose(y_tm[:S, :B, :H], (1, 0, 2))       # (B, S, H)
    h_out = jnp.transpose(h_last[:, :B, :H], (1, 0, 2))  # (B, L, H)
    return y, h_out


def _reference_forward(x, h, params):
    """Pure-JAX f32 reference (mirrors the PyTorch loops) for a sanity check."""
    y = x
    h_out = []
    for l, p in enumerate(params):
        B, S, _ = y.shape
        hs = h[:, l, :]
        outs = []
        for t in range(S):
            hs = jnp.tanh(y[:, t] @ p["wx"] + hs @ p["wh"] + p["b"])
            outs.append(hs)
        y = jnp.stack(outs, axis=1)
        h_out.append(hs)
    return y, jnp.stack(h_out, axis=1)


if __name__ == "__main__":
    batch_size, seq_len, input_size, hidden_size, num_layers = 2, 8, 16, 32, 2

    key = jax.random.PRNGKey(0)
    key, kx = jax.random.split(key)
    x = jax.random.normal(kx, (batch_size, seq_len, input_size), dtype=jnp.float32)
    h0 = jnp.zeros((batch_size, num_layers, hidden_size), dtype=jnp.float32)

    params = init_rnn_params(key, input_size, hidden_size, num_layers)

    y, h_final = rnn_forward(x, h0, params)
    y = jax.block_until_ready(y)
    h_final = jax.block_until_ready(h_final)

    assert y.shape == (batch_size, seq_len, hidden_size)
    assert h_final.shape == (batch_size, num_layers, hidden_size)

    # Kernel uses bf16 weights / bf16 MXU passes (f32 accumulation), so the
    # tolerance vs. the pure-f32 reference is loosened accordingly.
    y_ref, h_ref = _reference_forward(x, h0, params)
    assert jnp.allclose(y, y_ref, atol=2.5e-2), "y mismatch vs reference"
    assert jnp.allclose(h_final, h_ref, atol=2.5e-2), "h mismatch vs reference"

    print("KERNEL_OK")
</pallas_src>

<mosaic_0001>
module attributes {stable_mosaic.version = 11 : i64} {
  func.func @_fused_rnn_kernel(%arg0: i32, %arg1: memref<8x8x128xf32, #tpu.memory_space<vmem>>, %arg2: memref<2x8x128xf32, #tpu.memory_space<vmem>>, %arg3: memref<1x128xf32, #tpu.memory_space<vmem>>, %arg4: memref<1x1x128xf32, #tpu.memory_space<vmem>>, %arg5: memref<128x128xbf16, #tpu.memory_space<any>>, %arg6: memref<1x128x128xbf16, #tpu.memory_space<any>>, %arg7: memref<2x128x128xbf16, #tpu.memory_space<any>>, %arg8: memref<8x8x128xf32, #tpu.memory_space<vmem>>, %arg9: memref<2x8x128xf32, #tpu.memory_space<vmem>>, %arg10: memref<128x128xbf16, #tpu.memory_space<vmem>>, %arg11: memref<1x128x128xbf16, #tpu.memory_space<vmem>>, %arg12: memref<2x128x128xbf16, #tpu.memory_space<vmem>>, %arg13: memref<8x8x128xf32, #tpu.memory_space<vmem>>, %arg14: memref<3x!tpu.dma_semaphore, #tpu.memory_space<semaphore_mem>>) attributes {dimension_semantics = [#tpu.dimension_semantics<arbitrary>], iteration_bounds = array<i64: 1>, scalar_prefetch = 0 : i64, scratch_operands = 5 : i64, tpu.core_type = #tpu.core_type<tc>, window_params = [{transform_indices = @transform_0, window_bounds = array<i64: 8, 8, 128>}, {pipeline_mode = #tpu.pipeline_mode<synchronous>, transform_indices = @transform_1, window_bounds = array<i64: 2, 8, 128>}, {pipeline_mode = #tpu.pipeline_mode<synchronous>, transform_indices = @transform_2, window_bounds = array<i64: 1, 128>}, {pipeline_mode = #tpu.pipeline_mode<synchronous>, transform_indices = @transform_3, window_bounds = array<i64: 1, 1, 128>}, {}, {}, {}, {transform_indices = @transform_7, window_bounds = array<i64: 8, 8, 128>}, {pipeline_mode = #tpu.pipeline_mode<synchronous>, transform_indices = @transform_8, window_bounds = array<i64: 2, 8, 128>}]} {
    %c0_i32 = arith.constant 0 : i32
    %0 = arith.cmpi eq, %arg0, %c0_i32 : i32
    %1 = arith.extui %0 : i1 to i32
    %c0_i32_0 = arith.constant 0 : i32
    %2 = arith.cmpi ne, %1, %c0_i32_0 : i32
    scf.if %2 {
      %c0_i32_146 = arith.constant 0 : i32
      %183 = tpu.memref_slice %arg14[%c0_i32_146] : memref<3x!tpu.dma_semaphore, #tpu.memory_space<semaphore_mem>> -> memref<1x!tpu.dma_semaphore, #tpu.memory_space<semaphore_mem>>
      %184 = tpu.memref_squeeze %183 : memref<1x!tpu.dma_semaphore, #tpu.memory_space<semaphore_mem>> -> memref<!tpu.dma_semaphore, #tpu.memory_space<semaphore_mem>>
      tpu.enqueue_dma source(%arg5 : memref<128x128xbf16, #tpu.memory_space<any>>) target(%arg10 : memref<128x128xbf16, #tpu.memory_space<vmem>>) target_semaphore(%184 : memref<!tpu.dma_semaphore, #tpu.memory_space<semaphore_mem>>)
      %c1_i32 = arith.constant 1 : i32
      %185 = tpu.memref_slice %arg14[%c1_i32] : memref<3x!tpu.dma_semaphore, #tpu.memory_space<semaphore_mem>> -> memref<1x!tpu.dma_semaphore, #tpu.memory_space<semaphore_mem>>
      %186 = tpu.memref_squeeze %185 : memref<1x!tpu.dma_semaphore, #tpu.memory_space<semaphore_mem>> -> memref<!tpu.dma_semaphore, #tpu.memory_space<semaphore_mem>>
      tpu.enqueue_dma source(%arg6 : memref<1x128x128xbf16, #tpu.memory_space<any>>) target(%arg11 : memref<1x128x128xbf16, #tpu.memory_space<vmem>>) target_semaphore(%186 : memref<!tpu.dma_semaphore, #tpu.memory_space<semaphore_mem>>)
      %c2_i32 = arith.constant 2 : i32
      %187 = tpu.memref_slice %arg14[%c2_i32] : memref<3x!tpu.dma_semaphore, #tpu.memory_space<semaphore_mem>> -> memref<1x!tpu.dma_semaphore, #tpu.memory_space<semaphore_mem>>
      %188 = tpu.memref_squeeze %187 : memref<1x!tpu.dma_semaphore, #tpu.memory_space<semaphore_mem>> -> memref<!tpu.dma_semaphore, #tpu.memory_space<semaphore_mem>>
      tpu.enqueue_dma source(%arg7 : memref<2x128x128xbf16, #tpu.memory_space<any>>) target(%arg12 : memref<2x128x128xbf16, #tpu.memory_space<vmem>>) target_semaphore(%188 : memref<!tpu.dma_semaphore, #tpu.memory_space<semaphore_mem>>)
      %c0_i32_147 = arith.constant 0 : i32
      %189 = tpu.memref_slice %arg14[%c0_i32_147] : memref<3x!tpu.dma_semaphore, #tpu.memory_space<semaphore_mem>> -> memref<1x!tpu.dma_semaphore, #tpu.memory_space<semaphore_mem>>
      %190 = tpu.memref_squeeze %189 : memref<1x!tpu.dma_semaphore, #tpu.memory_space<semaphore_mem>> -> memref<!tpu.dma_semaphore, #tpu.memory_space<semaphore_mem>>
      tpu.wait_dma2 semaphore(%190 : memref<!tpu.dma_semaphore, #tpu.memory_space<semaphore_mem>>) src(%arg5 : memref<128x128xbf16, #tpu.memory_space<any>>) dst(%arg10 : memref<128x128xbf16, #tpu.memory_space<vmem>>)
      %c1_i32_148 = arith.constant 1 : i32
      %191 = tpu.memref_slice %arg14[%c1_i32_148] : memref<3x!tpu.dma_semaphore, #tpu.memory_space<semaphore_mem>> -> memref<1x!tpu.dma_semaphore, #tpu.memory_space<semaphore_mem>>
      %192 = tpu.memref_squeeze %191 : memref<1x!tpu.dma_semaphore, #tpu.memory_space<semaphore_mem>> -> memref<!tpu.dma_semaphore, #tpu.memory_space<semaphore_mem>>
      tpu.wait_dma2 semaphore(%192 : memref<!tpu.dma_semaphore, #tpu.memory_space<semaphore_mem>>) src(%arg6 : memref<1x128x128xbf16, #tpu.memory_space<any>>) dst(%arg11 : memref<1x128x128xbf16, #tpu.memory_space<vmem>>)
      %c2_i32_149 = arith.constant 2 : i32
      %193 = tpu.memref_slice %arg14[%c2_i32_149] : memref<3x!tpu.dma_semaphore, #tpu.memory_space<semaphore_mem>> -> memref<1x!tpu.dma_semaphore, #tpu.memory_space<semaphore_mem>>
      %194 = tpu.memref_squeeze %193 : memref<1x!tpu.dma_semaphore, #tpu.memory_space<semaphore_mem>> -> memref<!tpu.dma_semaphore, #tpu.memory_space<semaphore_mem>>
      tpu.wait_dma2 semaphore(%194 : memref<!tpu.dma_semaphore, #tpu.memory_space<semaphore_mem>>) src(%arg7 : memref<2x128x128xbf16, #tpu.memory_space<any>>) dst(%arg12 : memref<2x128x128xbf16, #tpu.memory_space<vmem>>)
      %c0_150 = arith.constant 0 : index
      %c0_151 = arith.constant 0 : index
      %c0_152 = arith.constant 0 : index
      %195 = vector.load %arg2[%c0_150, %c0_151, %c0_152] : memref<2x8x128xf32, #tpu.memory_space<vmem>>, vector<2x8x128xf32>
      %c0_153 = arith.constant 0 : index
      %c0_154 = arith.constant 0 : index
      %c0_155 = arith.constant 0 : index
      %196 = vector.load %arg9[%c0_153, %c0_154, %c0_155] : memref<2x8x128xf32, #tpu.memory_space<vmem>>, vector<2x8x128xf32>
      tpu.vector_store %arg9[%c0_153, %c0_154, %c0_155], %195 {strides = array<i32>} : memref<2x8x128xf32, #tpu.memory_space<vmem>>, vector<2x8x128xf32>,
    } else {
    }
    %c0 = arith.constant 0 : index
    %c0_1 = arith.constant 0 : index
    %c0_2 = arith.constant 0 : index
    %3 = vector.load %arg1[%c0, %c0_1, %c0_2] : memref<8x8x128xf32, #tpu.memory_space<vmem>>, vector<8x8x128xf32>
    %4 = vector.shape_cast %3 : vector<8x8x128xf32> to vector<64x128xf32>
    %c0_3 = arith.constant 0 : index
    %c0_4 = arith.constant 0 : index
    %5 = vector.load %arg10[%c0_3, %c0_4] : memref<128x128xbf16, #tpu.memory_space<vmem>>, vector<128x128xbf16>
    %c0_5 = arith.constant 0 : index
    %c0_6 = arith.constant 0 : index
    %6 = vector.load %arg3[%c0_5, %c0_6] : memref<1x128xf32, #tpu.memory_space<vmem>>, vector<1x128xf32>
    %7 = arith.truncf %4 : vector<64x128xf32> to vector<64x128xbf16>
    %cst = arith.constant dense<0.000000e+00> : vector<64x128xf32>
    %8 = tpu.matmul %7, %5, %cst {dimension_numbers = #tpu.dot_dimension_numbers<[1], [0], [0], [1], [0, 0, 1, 1], [], []>} : vector<64x128xbf16>, vector<128x128xbf16>, vector<64x128xf32> -> vector<64x128xf32>
    %9 = vector.broadcast %6 : vector<1x128xf32> to vector<64x128xf32>
    %10 = arith.addf %8, %9 : vector<64x128xf32>
    %11 = vector.shape_cast %10 : vector<64x128xf32> to vector<8x8x128xf32>
    %c0_7 = arith.constant 0 : index
    %c0_8 = arith.constant 0 : index
    %c0_9 = arith.constant 0 : index
    %12 = vector.load %arg13[%c0_7, %c0_8, %c0_9] : memref<8x8x128xf32, #tpu.memory_space<vmem>>, vector<8x8x128xf32>
    tpu.vector_store %arg13[%c0_7, %c0_8, %c0_9], %11 {strides = array<i32>} : memref<8x8x128xf32, #tpu.memory_space<vmem>>, vector<8x8x128xf32>,
    %c0_10 = arith.constant 0 : index
    %c0_11 = arith.constant 0 : index
    %c0_12 = arith.constant 0 : index
    %13 = vector.load %arg12[%c0_10, %c0_11, %c0_12] : memref<2x128x128xbf16, #tpu.memory_space<vmem>>, vector<1x128x128xbf16>
    %14 = vector.shape_cast %13 : vector<1x128x128xbf16> to vector<128x128xbf16>
    %c0_13 = arith.constant 0 : index
    %c0_14 = arith.constant 0 : index
    %c0_15 = arith.constant 0 : index
    %15 = vector.load %arg9[%c0_13, %c0_14, %c0_15] : memref<2x8x128xf32, #tpu.memory_space<vmem>>, vector<1x8x128xf32>
    %16 = vector.shape_cast %15 : vector<1x8x128xf32> to vector<8x128xf32>
    %17 = arith.truncf %16 : vector<8x128xf32> to vector<8x128xbf16>
    %cst_16 = arith.constant dense<0.000000e+00> : vector<8x128xf32>
    %18 = tpu.matmul %17, %14, %cst_16 {dimension_numbers = #tpu.dot_dimension_numbers<[1], [0], [0], [1], [0, 0, 1, 1], [], []>} : vector<8x128xbf16>, vector<128x128xbf16>, vector<8x128xf32> -> vector<8x128xf32>
    %c0_17 = arith.constant 0 : index
    %c0_18 = arith.constant 0 : index
    %c0_19 = arith.constant 0 : index
    %19 = vector.load %arg13[%c0_17, %c0_18, %c0_19] : memref<8x8x128xf32, #tpu.memory_space<vmem>>, vector<1x8x128xf32>
    %20 = vector.shape_cast %19 : vector<1x8x128xf32> to vector<8x128xf32>
    %21 = arith.addf %18, %20 : vector<8x128xf32>
    %22 = math.tanh %21 : vector<8x128xf32>
    %c0_20 = arith.constant 0 : index
    %c0_21 = arith.constant 0 : index
    %c0_22 = arith.constant 0 : index
    %23 = vector.load %arg13[%c0_20, %c0_21, %c0_22] : memref<8x8x128xf32, #tpu.memory_space<vmem>>, vector<1x8x128xf32>
    %24 = vector.shape_cast %23 : vector<1x8x128xf32> to vector<8x128xf32>
    %25 = vector.shape_cast %22 : vector<8x128xf32> to vector<1x8x128xf32>
    tpu.vector_store %arg13[%c0_20, %c0_21, %c0_22], %25 {strides = array<i32>} : memref<8x8x128xf32, #tpu.memory_space<vmem>>, vector<1x8x128xf32>,
    %26 = arith.truncf %22 : vector<8x128xf32> to vector<8x128xbf16>
    %cst_23 = arith.constant dense<0.000000e+00> : vector<8x128xf32>
    %27 = tpu.matmul %26, %14, %cst_23 {dimension_numbers = #tpu.dot_dimension_numbers<[1], [0], [0], [1], [0, 0, 1, 1], [], []>} : vector<8x128xbf16>, vector<128x128xbf16>, vector<8x128xf32> -> vector<8x128xf32>
    %c1 = arith.constant 1 : index
    %c0_24 = arith.constant 0 : index
    %c0_25 = arith.constant 0 : index
    %28 = vector.load %arg13[%c1, %c0_24, %c0_25] : memref<8x8x128xf32, #tpu.memory_space<vmem>>, vector<1x8x128xf32>
    %29 = vector.shape_cast %28 : vector<1x8x128xf32> to vector<8x128xf32>
    %30 = arith.addf %27, %29 : vector<8x128xf32>
    %31 = math.tanh %30 : vector<8x128xf32>
    %c1_26 = arith.constant 1 : index
    %c0_27 = arith.constant 0 : index
    %c0_28 = arith.constant 0 : index
    %32 = vector.load %arg13[%c1_26, %c0_27, %c0_28] : memref<8x8x128xf32, #tpu.memory_space<vmem>>, vector<1x8x128xf32>
    %33 = vector.shape_cast %32 : vector<1x8x128xf32> to vector<8x128xf32>
    %34 = vector.shape_cast %31 : vector<8x128xf32> to vector<1x8x128xf32>
    tpu.vector_store %arg13[%c1_26, %c0_27, %c0_28], %34 {strides = array<i32>} : memref<8x8x128xf32, #tpu.memory_space<vmem>>, vector<1x8x128xf32>,
    %35 = arith.truncf %31 : vector<8x128xf32> to vector<8x128xbf16>
    %cst_29 = arith.constant dense<0.000000e+00> : vector<8x128xf32>
    %36 = tpu.matmul %35, %14, %cst_29 {dimension_numbers = #tpu.dot_dimension_numbers<[1], [0], [0], [1], [0, 0, 1, 1], [], []>} : vector<8x128xbf16>, vector<128x128xbf16>, vector<8x128xf32> -> vector<8x128xf32>
    %c2 = arith.constant 2 : index
    %c0_30 = arith.constant 0 : index
    %c0_31 = arith.constant 0 : index
    %37 = vector.load %arg13[%c2, %c0_30, %c0_31] : memref<8x8x128xf32, #tpu.memory_space<vmem>>, vector<1x8x128xf32>
    %38 = vector.shape_cast %37 : vector<1x8x128xf32> to vector<8x128xf32>
    %39 = arith.addf %36, %38 : vector<8x128xf32>
    %40 = math.tanh %39 : vector<8x128xf32>
    %c2_32 = arith.constant 2 : index
    %c0_33 = arith.constant 0 : index
    %c0_34 = arith.constant 0 : index
    %41 = vector.load %arg13[%c2_32, %c0_33, %c0_34] : memref<8x8x128xf32, #tpu.memory_space<vmem>>, vector<1x8x128xf32>
    %42 = vector.shape_cast %41 : vector<1x8x128xf32> to vector<8x128xf32>
    %43 = vector.shape_cast %40 : vector<8x128xf32> to vector<1x8x128xf32>
    tpu.vector_store %arg13[%c2_32, %c0_33, %c0_34], %43 {strides = array<i32>} : memref<8x8x128xf32, #tpu.memory_space<vmem>>, vector<1x8x128xf32>,
    %44 = arith.truncf %40 : vector<8x128xf32> to vector<8x128xbf16>
    %cst_35 = arith.constant dense<0.000000e+00> : vector<8x128xf32>
    %45 = tpu.matmul %44, %14, %cst_35 {dimension_numbers = #tpu.dot_dimension_numbers<[1], [0], [0], [1], [0, 0, 1, 1], [], []>} : vector<8x128xbf16>, vector<128x128xbf16>, vector<8x128xf32> -> vector<8x128xf32>
    %c3 = arith.constant 3 : index
    %c0_36 = arith.constant 0 : index
    %c0_37 = arith.constant 0 : index
    %46 = vector.load %arg13[%c3, %c0_36, %c0_37] : memref<8x8x128xf32, #tpu.memory_space<vmem>>, vector<1x8x128xf32>
    %47 = vector.shape_cast %46 : vector<1x8x128xf32> to vector<8x128xf32>
    %48 = arith.addf %45, %47 : vector<8x128xf32>
    %49 = math.tanh %48 : vector<8x128xf32>
    %c3_38 = arith.constant 3 : index
    %c0_39 = arith.constant 0 : index
    %c0_40 = arith.constant 0 : index
    %50 = vector.load %arg13[%c3_38, %c0_39, %c0_40] : memref<8x8x128xf32, #tpu.memory_space<vmem>>, vector<1x8x128xf32>
    %51 = vector.shape_cast %50 : vector<1x8x128xf32> to vector<8x128xf32>
    %52 = vector.shape_cast %49 : vector<8x128xf32> to vector<1x8x128xf32>
    tpu.vector_store %arg13[%c3_38, %c0_39, %c0_40], %52 {strides = array<i32>} : memref<8x8x128xf32, #tpu.memory_space<vmem>>, vector<1x8x128xf32>,
    %53 = arith.truncf %49 : vector<8x128xf32> to vector<8x128xbf16>
    %cst_41 = arith.constant dense<0.000000e+00> : vector<8x128xf32>
    %54 = tpu.matmul %53, %14, %cst_41 {dimension_numbers = #tpu.dot_dimension_numbers<[1], [0], [0], [1], [0, 0, 1, 1], [], []>} : vector<8x128xbf16>, vector<128x128xbf16>, vector<8x128xf32> -> vector<8x128xf32>
    %c4 = arith.constant 4 : index
    %c0_42 = arith.constant 0 : index
    %c0_43 = arith.constant 0 : index
    %55 = vector.load %arg13[%c4, %c0_42, %c0_43] : memref<8x8x128xf32, #tpu.memory_space<vmem>>, vector<1x8x128xf32>
    %56 = vector.shape_cast %55 : vector<1x8x128xf32> to vector<8x128xf32>
    %57 = arith.addf %54, %56 : vector<8x128xf32>
    %58 = math.tanh %57 : vector<8x128xf32>
    %c4_44 = arith.constant 4 : index
    %c0_45 = arith.constant 0 : index
    %c0_46 = arith.constant 0 : index
    %59 = vector.load %arg13[%c4_44, %c0_45, %c0_46] : memref<8x8x128xf32, #tpu.memory_space<vmem>>, vector<1x8x128xf32>
    %60 = vector.shape_cast %59 : vector<1x8x128xf32> to vector<8x128xf32>
    %61 = vector.shape_cast %58 : vector<8x128xf32> to vector<1x8x128xf32>
    tpu.vector_store %arg13[%c4_44, %c0_45, %c0_46], %61 {strides = array<i32>} : memref<8x8x128xf32, #tpu.memory_space<vmem>>, vector<1x8x128xf32>,
    %62 = arith.truncf %58 : vector<8x128xf32> to vector<8x128xbf16>
    %cst_47 = arith.constant dense<0.000000e+00> : vector<8x128xf32>
    %63 = tpu.matmul %62, %14, %cst_47 {dimension_numbers = #tpu.dot_dimension_numbers<[1], [0], [0], [1], [0, 0, 1, 1], [], []>} : vector<8x128xbf16>, vector<128x128xbf16>, vector<8x128xf32> -> vector<8x128xf32>
    %c5 = arith.constant 5 : index
    %c0_48 = arith.constant 0 : index
    %c0_49 = arith.constant 0 : index
    %64 = vector.load %arg13[%c5, %c0_48, %c0_49] : memref<8x8x128xf32, #tpu.memory_space<vmem>>, vector<1x8x128xf32>
    %65 = vector.shape_cast %64 : vector<1x8x128xf32> to vector<8x128xf32>
    %66 = arith.addf %63, %65 : vector<8x128xf32>
    %67 = math.tanh %66 : vector<8x128xf32>
    %c5_50 = arith.constant 5 : index
    %c0_51 = arith.constant 0 : index
    %c0_52 = arith.constant 0 : index
    %68 = vector.load %arg13[%c5_50, %c0_51, %c0_52] : memref<8x8x128xf32, #tpu.memory_space<vmem>>, vector<1x8x128xf32>
    %69 = vector.shape_cast %68 : vector<1x8x128xf32> to vector<8x128xf32>
    %70 = vector.shape_cast %67 : vector<8x128xf32> to vector<1x8x128xf32>
    tpu.vector_store %arg13[%c5_50, %c0_51, %c0_52], %70 {strides = array<i32>} : memref<8x8x128xf32, #tpu.memory_space<vmem>>, vector<1x8x128xf32>,
    %71 = arith.truncf %67 : vector<8x128xf32> to vector<8x128xbf16>
    %cst_53 = arith.constant dense<0.000000e+00> : vector<8x128xf32>
    %72 = tpu.matmul %71, %14, %cst_53 {dimension_numbers = #tpu.dot_dimension_numbers<[1], [0], [0], [1], [0, 0, 1, 1], [], []>} : vector<8x128xbf16>, vector<128x128xbf16>, vector<8x128xf32> -> vector<8x128xf32>
    %c6 = arith.constant 6 : index
    %c0_54 = arith.constant 0 : index
    %c0_55 = arith.constant 0 : index
    %73 = vector.load %arg13[%c6, %c0_54, %c0_55] : memref<8x8x128xf32, #tpu.memory_space<vmem>>, vector<1x8x128xf32>
    %74 = vector.shape_cast %73 : vector<1x8x128xf32> to vector<8x128xf32>
    %75 = arith.addf %72, %74 : vector<8x128xf32>
    %76 = math.tanh %75 : vector<8x128xf32>
    %c6_56 = arith.constant 6 : index
    %c0_57 = arith.constant 0 : index
    %c0_58 = arith.constant 0 : index
    %77 = vector.load %arg13[%c6_56, %c0_57, %c0_58] : memref<8x8x128xf32, #tpu.memory_space<vmem>>, vector<1x8x128xf32>
    %78 = vector.shape_cast %77 : vector<1x8x128xf32> to vector<8x128xf32>
    %79 = vector.shape_cast %76 : vector<8x128xf32> to vector<1x8x128xf32>
    tpu.vector_store %arg13[%c6_56, %c0_57, %c0_58], %79 {strides = array<i32>} : memref<8x8x128xf32, #tpu.memory_space<vmem>>, vector<1x8x128xf32>,
    %80 = arith.truncf %76 : vector<8x128xf32> to vector<8x128xbf16>
    %cst_59 = arith.constant dense<0.000000e+00> : vector<8x128xf32>
    %81 = tpu.matmul %80, %14, %cst_59 {dimension_numbers = #tpu.dot_dimension_numbers<[1], [0], [0], [1], [0, 0, 1, 1], [], []>} : vector<8x128xbf16>, vector<128x128xbf16>, vector<8x128xf32> -> vector<8x128xf32>
    %c7 = arith.constant 7 : index
    %c0_60 = arith.constant 0 : index
    %c0_61 = arith.constant 0 : index
    %82 = vector.load %arg13[%c7, %c0_60, %c0_61] : memref<8x8x128xf32, #tpu.memory_space<vmem>>, vector<1x8x128xf32>
    %83 = vector.shape_cast %82 : vector<1x8x128xf32> to vector<8x128xf32>
    %84 = arith.addf %81, %83 : vector<8x128xf32>
    %85 = math.tanh %84 : vector<8x128xf32>
    %c7_62 = arith.constant 7 : index
    %c0_63 = arith.constant 0 : index
    %c0_64 = arith.constant 0 : index
    %86 = vector.load %arg13[%c7_62, %c0_63, %c0_64] : memref<8x8x128xf32, #tpu.memory_space<vmem>>, vector<1x8x128xf32>
    %87 = vector.shape_cast %86 : vector<1x8x128xf32> to vector<8x128xf32>
    %88 = vector.shape_cast %85 : vector<8x128xf32> to vector<1x8x128xf32>
    tpu.vector_store %arg13[%c7_62, %c0_63, %c0_64], %88 {strides = array<i32>} : memref<8x8x128xf32, #tpu.memory_space<vmem>>, vector<1x8x128xf32>,
    %c0_65 = arith.constant 0 : index
    %c0_66 = arith.constant 0 : index
    %c0_67 = arith.constant 0 : index
    %89 = vector.load %arg9[%c0_65, %c0_66, %c0_67] : memref<2x8x128xf32, #tpu.memory_space<vmem>>, vector<1x8x128xf32>
    %90 = vector.shape_cast %89 : vector<1x8x128xf32> to vector<8x128xf32>
    %91 = vector.shape_cast %85 : vector<8x128xf32> to vector<1x8x128xf32>
    tpu.vector_store %arg9[%c0_65, %c0_66, %c0_67], %91 {strides = array<i32>} : memref<2x8x128xf32, #tpu.memory_space<vmem>>, vector<1x8x128xf32>,
    %c0_68 = arith.constant 0 : index
    %c0_69 = arith.constant 0 : index
    %c0_70 = arith.constant 0 : index
    %92 = vector.load %arg13[%c0_68, %c0_69, %c0_70] : memref<8x8x128xf32, #tpu.memory_space<vmem>>, vector<8x8x128xf32>
    %93 = vector.shape_cast %92 : vector<8x8x128xf32> to vector<64x128xf32>
    %c0_71 = arith.constant 0 : index
    %c0_72 = arith.constant 0 : index
    %c0_73 = arith.constant 0 : index
    %94 = vector.load %arg11[%c0_71, %c0_72, %c0_73] : memref<1x128x128xbf16, #tpu.memory_space<vmem>>, vector<1x128x128xbf16>
    %95 = vector.shape_cast %94 : vector<1x128x128xbf16> to vector<128x128xbf16>
    %c0_74 = arith.constant 0 : index
    %c0_75 = arith.constant 0 : index
    %c0_76 = arith.constant 0 : index
    %96 = vector.load %arg4[%c0_74, %c0_75, %c0_76] : memref<1x1x128xf32, #tpu.memory_space<vmem>>, vector<1x1x128xf32>
    %97 = vector.shape_cast %96 : vector<1x1x128xf32> to vector<1x128xf32>
    %98 = arith.truncf %93 : vector<64x128xf32> to vector<64x128xbf16>
    %cst_77 = arith.constant dense<0.000000e+00> : vector<64x128xf32>
    %99 = tpu.matmul %98, %95, %cst_77 {dimension_numbers = #tpu.dot_dimension_numbers<[1], [0], [0], [1], [0, 0, 1, 1], [], []>} : vector<64x128xbf16>, vector<128x128xbf16>, vector<64x128xf32> -> vector<64x128xf32>
    %100 = vector.broadcast %97 : vector<1x128xf32> to vector<64x128xf32>
    %101 = arith.addf %99, %100 : vector<64x128xf32>
    %102 = vector.shape_cast %101 : vector<64x128xf32> to vector<8x8x128xf32>
    %c0_78 = arith.constant 0 : index
    %c0_79 = arith.constant 0 : index
    %c0_80 = arith.constant 0 : index
    %103 = vector.load %arg13[%c0_78, %c0_79, %c0_80] : memref<8x8x128xf32, #tpu.memory_space<vmem>>, vector<8x8x128xf32>
    tpu.vector_store %arg13[%c0_78, %c0_79, %c0_80], %102 {strides = array<i32>} : memref<8x8x128xf32, #tpu.memory_space<vmem>>, vector<8x8x128xf32>,
    %c1_81 = arith.constant 1 : index
    %c0_82 = arith.constant 0 : index
    %c0_83 = arith.constant 0 : index
    %104 = vector.load %arg12[%c1_81, %c0_82, %c0_83] : memref<2x128x128xbf16, #tpu.memory_space<vmem>>, vector<1x128x128xbf16>
    %105 = vector.shape_cast %104 : vector<1x128x128xbf16> to vector<128x128xbf16>
    %c1_84 = arith.constant 1 : index
    %c0_85 = arith.constant 0 : index
    %c0_86 = arith.constant 0 : index
    %106 = vector.load %arg9[%c1_84, %c0_85, %c0_86] : memref<2x8x128xf32, #tpu.memory_space<vmem>>, vector<1x8x128xf32>
    %107 = vector.shape_cast %106 : vector<1x8x128xf32> to vector<8x128xf32>
    %108 = arith.truncf %107 : vector<8x128xf32> to vector<8x128xbf16>
    %cst_87 = arith.constant dense<0.000000e+00> : vector<8x128xf32>
    %109 = tpu.matmul %108, %105, %cst_87 {dimension_numbers = #tpu.dot_dimension_numbers<[1], [0], [0], [1], [0, 0, 1, 1], [], []>} : vector<8x128xbf16>, vector<128x128xbf16>, vector<8x128xf32> -> vector<8x128xf32>
    %c0_88 = arith.constant 0 : index
    %c0_89 = arith.constant 0 : index
    %c0_90 = arith.constant 0 : index
    %110 = vector.load %arg13[%c0_88, %c0_89, %c0_90] : memref<8x8x128xf32, #tpu.memory_space<vmem>>, vector<1x8x128xf32>
    %111 = vector.shape_cast %110 : vector<1x8x128xf32> to vector<8x128xf32>
    %112 = arith.addf %109, %111 : vector<8x128xf32>
    %113 = math.tanh %112 : vector<8x128xf32>
    %c0_91 = arith.constant 0 : index
    %c0_92 = arith.constant 0 : index
    %c0_93 = arith.constant 0 : index
    %114 = vector.load %arg8[%c0_91, %c0_92, %c0_93] : memref<8x8x128xf32, #tpu.memory_space<vmem>>, vector<1x8x128xf32>
    %115 = vector.shape_cast %114 : vector<1x8x128xf32> to vector<8x128xf32>
    %116 = vector.shape_cast %113 : vector<8x128xf32> to vector<1x8x128xf32>
    tpu.vector_store %arg8[%c0_91, %c0_92, %c0_93], %116 {strides = array<i32>} : memref<8x8x128xf32, #tpu.memory_space<vmem>>, vector<1x8x128xf32>,
    %117 = arith.truncf %113 : vector<8x128xf32> to vector<8x128xbf16>
    %cst_94 = arith.constant dense<0.000000e+00> : vector<8x128xf32>
    %118 = tpu.matmul %117, %105, %cst_94 {dimension_numbers = #tpu.dot_dimension_numbers<[1], [0], [0], [1], [0, 0, 1, 1], [], []>} : vector<8x128xbf16>, vector<128x128xbf16>, vector<8x128xf32> -> vector<8x128xf32>
    %c1_95 = arith.constant 1 : index
    %c0_96 = arith.constant 0 : index
    %c0_97 = arith.constant 0 : index
    %119 = vector.load %arg13[%c1_95, %c0_96, %c0_97] : memref<8x8x128xf32, #tpu.memory_space<vmem>>, vector<1x8x128xf32>
    %120 = vector.shape_cast %119 : vector<1x8x128xf32> to vector<8x128xf32>
    %121 = arith.addf %118, %120 : vector<8x128xf32>
    %122 = math.tanh %121 : vector<8x128xf32>
    %c1_98 = arith.constant 1 : index
    %c0_99 = arith.constant 0 : index
    %c0_100 = arith.constant 0 : index
    %123 = vector.load %arg8[%c1_98, %c0_99, %c0_100] : memref<8x8x128xf32, #tpu.memory_space<vmem>>, vector<1x8x128xf32>
    %124 = vector.shape_cast %123 : vector<1x8x128xf32> to vector<8x128xf32>
    %125 = vector.shape_cast %122 : vector<8x128xf32> to vector<1x8x128xf32>
    tpu.vector_store %arg8[%c1_98, %c0_99, %c0_100], %125 {strides = array<i32>} : memref<8x8x128xf32, #tpu.memory_space<vmem>>, vector<1x8x128xf32>,
    %126 = arith.truncf %122 : vector<8x128xf32> to vector<8x128xbf16>
    %cst_101 = arith.constant dense<0.000000e+00> : vector<8x128xf32>
    %127 = tpu.matmul %126, %105, %cst_101 {dimension_numbers = #tpu.dot_dimension_numbers<[1], [0], [0], [1], [0, 0, 1, 1], [], []>} : vector<8x128xbf16>, vector<128x128xbf16>, vector<8x128xf32> -> vector<8x128xf32>
    %c2_102 = arith.constant 2 : index
    %c0_103 = arith.constant 0 : index
    %c0_104 = arith.constant 0 : index
    %128 = vector.load %arg13[%c2_102, %c0_103, %c0_104] : memref<8x8x128xf32, #tpu.memory_space<vmem>>, vector<1x8x128xf32>
    %129 = vector.shape_cast %128 : vector<1x8x128xf32> to vector<8x128xf32>
    %130 = arith.addf %127, %129 : vector<8x128xf32>
    %131 = math.tanh %130 : vector<8x128xf32>
    %c2_105 = arith.constant 2 : index
    %c0_106 = arith.constant 0 : index
    %c0_107 = arith.constant 0 : index
    %132 = vector.load %arg8[%c2_105, %c0_106, %c0_107] : memref<8x8x128xf32, #tpu.memory_space<vmem>>, vector<1x8x128xf32>
    %133 = vector.shape_cast %132 : vector<1x8x128xf32> to vector<8x128xf32>
    %134 = vector.shape_cast %131 : vector<8x128xf32> to vector<1x8x128xf32>
    tpu.vector_store %arg8[%c2_105, %c0_106, %c0_107], %134 {strides = array<i32>} : memref<8x8x128xf32, #tpu.memory_space<vmem>>, vector<1x8x128xf32>,
    %135 = arith.truncf %131 : vector<8x128xf32> to vector<8x128xbf16>
    %cst_108 = arith.constant dense<0.000000e+00> : vector<8x128xf32>
    %136 = tpu.matmul %135, %105, %cst_108 {dimension_numbers = #tpu.dot_dimension_numbers<[1], [0], [0], [1], [0, 0, 1, 1], [], []>} : vector<8x128xbf16>, vector<128x128xbf16>, vector<8x128xf32> -> vector<8x128xf32>
    %c3_109 = arith.constant 3 : index
    %c0_110 = arith.constant 0 : index
    %c0_111 = arith.constant 0 : index
    %137 = vector.load %arg13[%c3_109, %c0_110, %c0_111] : memref<8x8x128xf32, #tpu.memory_space<vmem>>, vector<1x8x128xf32>
    %138 = vector.shape_cast %137 : vector<1x8x128xf32> to vector<8x128xf32>
    %139 = arith.addf %136, %138 : vector<8x128xf32>
    %140 = math.tanh %139 : vector<8x128xf32>
    %c3_112 = arith.constant 3 : index
    %c0_113 = arith.constant 0 : index
    %c0_114 = arith.constant 0 : index
    %141 = vector.load %arg8[%c3_112, %c0_113, %c0_114] : memref<8x8x128xf32, #tpu.memory_space<vmem>>, vector<1x8x128xf32>
    %142 = vector.shape_cast %141 : vector<1x8x128xf32> to vector<8x128xf32>
    %143 = vector.shape_cast %140 : vector<8x128xf32> to vector<1x8x128xf32>
    tpu.vector_store %arg8[%c3_112, %c0_113, %c0_114], %143 {strides = array<i32>} : memref<8x8x128xf32, #tpu.memory_space<vmem>>, vector<1x8x128xf32>,
    %144 = arith.truncf %140 : vector<8x128xf32> to vector<8x128xbf16>
    %cst_115 = arith.constant dense<0.000000e+00> : vector<8x128xf32>
    %145 = tpu.matmul %144, %105, %cst_115 {dimension_numbers = #tpu.dot_dimension_numbers<[1], [0], [0], [1], [0, 0, 1, 1], [], []>} : vector<8x128xbf16>, vector<128x128xbf16>, vector<8x128xf32> -> vector<8x128xf32>
    %c4_116 = arith.constant 4 : index
    %c0_117 = arith.constant 0 : index
    %c0_118 = arith.constant 0 : index
    %146 = vector.load %arg13[%c4_116, %c0_117, %c0_118] : memref<8x8x128xf32, #tpu.memory_space<vmem>>, vector<1x8x128xf32>
    %147 = vector.shape_cast %146 : vector<1x8x128xf32> to vector<8x128xf32>
    %148 = arith.addf %145, %147 : vector<8x128xf32>
    %149 = math.tanh %148 : vector<8x128xf32>
    %c4_119 = arith.constant 4 : index
    %c0_120 = arith.constant 0 : index
    %c0_121 = arith.constant 0 : index
    %150 = vector.load %arg8[%c4_119, %c0_120, %c0_121] : memref<8x8x128xf32, #tpu.memory_space<vmem>>, vector<1x8x128xf32>
    %151 = vector.shape_cast %150 : vector<1x8x128xf32> to vector<8x128xf32>
    %152 = vector.shape_cast %149 : vector<8x128xf32> to vector<1x8x128xf32>
    tpu.vector_store %arg8[%c4_119, %c0_120, %c0_121], %152 {strides = array<i32>} : memref<8x8x128xf32, #tpu.memory_space<vmem>>, vector<1x8x128xf32>,
    %153 = arith.truncf %149 : vector<8x128xf32> to vector<8x128xbf16>
    %cst_122 = arith.constant dense<0.000000e+00> : vector<8x128xf32>
    %154 = tpu.matmul %153, %105, %cst_122 {dimension_numbers = #tpu.dot_dimension_numbers<[1], [0], [0], [1], [0, 0, 1, 1], [], []>} : vector<8x128xbf16>, vector<128x128xbf16>, vector<8x128xf32> -> vector<8x128xf32>
    %c5_123 = arith.constant 5 : index
    %c0_124 = arith.constant 0 : index
    %c0_125 = arith.constant 0 : index
    %155 = vector.load %arg13[%c5_123, %c0_124, %c0_125] : memref<8x8x128xf32, #tpu.memory_space<vmem>>, vector<1x8x128xf32>
    %156 = vector.shape_cast %155 : vector<1x8x128xf32> to vector<8x128xf32>
    %157 = arith.addf %154, %156 : vector<8x128xf32>
    %158 = math.tanh %157 : vector<8x128xf32>
    %c5_126 = arith.constant 5 : index
    %c0_127 = arith.constant 0 : index
    %c0_128 = arith.constant 0 : index
    %159 = vector.load %arg8[%c5_126, %c0_127, %c0_128] : memref<8x8x128xf32, #tpu.memory_space<vmem>>, vector<1x8x128xf32>
    %160 = vector.shape_cast %159 : vector<1x8x128xf32> to vector<8x128xf32>
    %161 = vector.shape_cast %158 : vector<8x128xf32> to vector<1x8x128xf32>
    tpu.vector_store %arg8[%c5_126, %c0_127, %c0_128], %161 {strides = array<i32>} : memref<8x8x128xf32, #tpu.memory_space<vmem>>, vector<1x8x128xf32>,
    %162 = arith.truncf %158 : vector<8x128xf32> to vector<8x128xbf16>
    %cst_129 = arith.constant dense<0.000000e+00> : vector<8x128xf32>
    %163 = tpu.matmul %162, %105, %cst_129 {dimension_numbers = #tpu.dot_dimension_numbers<[1], [0], [0], [1], [0, 0, 1, 1], [], []>} : vector<8x128xbf16>, vector<128x128xbf16>, vector<8x128xf32> -> vector<8x128xf32>
    %c6_130 = arith.constant 6 : index
    %c0_131 = arith.constant 0 : index
    %c0_132 = arith.constant 0 : index
    %164 = vector.load %arg13[%c6_130, %c0_131, %c0_132] : memref<8x8x128xf32, #tpu.memory_space<vmem>>, vector<1x8x128xf32>
    %165 = vector.shape_cast %164 : vector<1x8x128xf32> to vector<8x128xf32>
    %166 = arith.addf %163, %165 : vector<8x128xf32>
    %167 = math.tanh %166 : vector<8x128xf32>
    %c6_133 = arith.constant 6 : index
    %c0_134 = arith.constant 0 : index
    %c0_135 = arith.constant 0 : index
    %168 = vector.load %arg8[%c6_133, %c0_134, %c0_135] : memref<8x8x128xf32, #tpu.memory_space<vmem>>, vector<1x8x128xf32>
    %169 = vector.shape_cast %168 : vector<1x8x128xf32> to vector<8x128xf32>
    %170 = vector.shape_cast %167 : vector<8x128xf32> to vector<1x8x128xf32>
    tpu.vector_store %arg8[%c6_133, %c0_134, %c0_135], %170 {strides = array<i32>} : memref<8x8x128xf32, #tpu.memory_space<vmem>>, vector<1x8x128xf32>,
    %171 = arith.truncf %167 : vector<8x128xf32> to vector<8x128xbf16>
    %cst_136 = arith.constant dense<0.000000e+00> : vector<8x128xf32>
    %172 = tpu.matmul %171, %105, %cst_136 {dimension_numbers = #tpu.dot_dimension_numbers<[1], [0], [0], [1], [0, 0, 1, 1], [], []>} : vector<8x128xbf16>, vector<128x128xbf16>, vector<8x128xf32> -> vector<8x128xf32>
    %c7_137 = arith.constant 7 : index
    %c0_138 = arith.constant 0 : index
    %c0_139 = arith.constant 0 : index
    %173 = vector.load %arg13[%c7_137, %c0_138, %c0_139] : memref<8x8x128xf32, #tpu.memory_space<vmem>>, vector<1x8x128xf32>
    %174 = vector.shape_cast %173 : vector<1x8x128xf32> to vector<8x128xf32>
    %175 = arith.addf %172, %174 : vector<8x128xf32>
    %176 = math.tanh %175 : vector<8x128xf32>
    %c7_140 = arith.constant 7 : index
    %c0_141 = arith.constant 0 : index
    %c0_142 = arith.constant 0 : index
    %177 = vector.load %arg8[%c7_140, %c0_141, %c0_142] : memref<8x8x128xf32, #tpu.memory_space<vmem>>, vector<1x8x128xf32>
    %178 = vector.shape_cast %177 : vector<1x8x128xf32> to vector<8x128xf32>
    %179 = vector.shape_cast %176 : vector<8x128xf32> to vector<1x8x128xf32>
    tpu.vector_store %arg8[%c7_140, %c0_141, %c0_142], %179 {strides = array<i32>} : memref<8x8x128xf32, #tpu.memory_space<vmem>>, vector<1x8x128xf32>,
    %c1_143 = arith.constant 1 : index
    %c0_144 = arith.constant 0 : index
    %c0_145 = arith.constant 0 : index
    %180 = vector.load %arg9[%c1_143, %c0_144, %c0_145] : memref<2x8x128xf32, #tpu.memory_space<vmem>>, vector<1x8x128xf32>
    %181 = vector.shape_cast %180 : vector<1x8x128xf32> to vector<8x128xf32>
    %182 = vector.shape_cast %176 : vector<8x128xf32> to vector<1x8x128xf32>
    tpu.vector_store %arg9[%c1_143, %c0_144, %c0_145], %182 {strides = array<i32>} : memref<2x8x128xf32, #tpu.memory_space<vmem>>, vector<1x8x128xf32>,
    return
  }
  func.func @transform_0(%arg0: i32) -> (i32, i32, i32) {
    %c0_i32 = arith.constant 0 : i32
    %c0_i32_0 = arith.constant 0 : i32
    %c0_i32_1 = arith.constant 0 : i32
    return %arg0, %c0_i32, %c0_i32_0 : i32, i32, i32
  }
  func.func @transform_1(%arg0: i32) -> (i32, i32, i32) {
    %c0_i32 = arith.constant 0 : i32
    %c0_i32_0 = arith.constant 0 : i32
    %c0_i32_1 = arith.constant 0 : i32
    %c0_i32_2 = arith.constant 0 : i32
    return %c0_i32, %c0_i32_0, %c0_i32_1 : i32, i32, i32
  }
  func.func @transform_2(%arg0: i32) -> (i32, i32) {
    %c0_i32 = arith.constant 0 : i32
    %c0_i32_0 = arith.constant 0 : i32
    %c0_i32_1 = arith.constant 0 : i32
    return %c0_i32, %c0_i32_0 : i32, i32
  }
  func.func @transform_3(%arg0: i32) -> (i32, i32, i32) {
    %c0_i32 = arith.constant 0 : i32
    %c0_i32_0 = arith.constant 0 : i32
    %c0_i32_1 = arith.constant 0 : i32
    %c0_i32_2 = arith.constant 0 : i32
    return %c0_i32, %c0_i32_0, %c0_i32_1 : i32, i32, i32
  }
  func.func @transform_7(%arg0: i32) -> (i32, i32, i32) {
    %c0_i32 = arith.constant 0 : i32
    %c0_i32_0 = arith.constant 0 : i32
    %c0_i32_1 = arith.constant 0 : i32
    return %arg0, %c0_i32, %c0_i32_0 : i32, i32, i32
  }
  func.func @transform_8(%arg0: i32) -> (i32, i32, i32) {
    %c0_i32 = arith.constant 0 : i32
    %c0_i32_0 = arith.constant 0 : i32
    %c0_i32_1 = arith.constant 0 : i32
    %c0_i32_2 = arith.constant 0 : i32
    return %c0_i32, %c0_i32_0, %c0_i32_1 : i32, i32, i32
  }
}

</mosaic_0001>

<llo_original>
// kernel: rnn_forward.1
$region0: #{rnn_forward.1}
  #allocation0 [shape = 'u32[]', space=smem, size = 0x4, offset = 0x4, fixed_abs, tag = 'smem constant byte address 0x4 - core index']
  #allocation1 [shape = 'u32[72,128]{1,0:T(1,128)}', space=vmem, size = 0x9000, scoped, tag = 'internal scratch']
  #allocation2 [shape = 'bf16[128,128]{1,0:T(8,128)(2,1)}', space=vmem, size = 0x8000, scoped, tag = 'scratch operand']
  #allocation3 [shape = 'bf16[1,128,128]{2,1,0:T(8,128)(2,1)}', space=vmem, size = 0x8000, scoped, tag = 'scratch operand']
  #allocation4 [shape = 'bf16[2,128,128]{2,1,0:T(8,128)(2,1)}', space=vmem, size = 0x10000, scoped, tag = 'scratch operand']
  #allocation5 [shape = 'f32[8,8,128]{2,1,0:T(8,128)}', space=vmem, size = 0x8000, scoped, tag = 'scratch operand']
  #allocation6 [shape = 's32[3]{0}', space=sflag, size = 0xc, scoped, tag = 'scratch operand']
  #allocation7 [shape = 's32[]', space=sflag, size = 0x4, offset = 0, fixed_abs, tag = 'sflag constant byte address 0x0 - dummy sync flag']
  #allocation8 [shape = 's32[]', space=sflag, size = 0x4, offset = 0, fixed_abs, tag = 'sflag constant byte address 0x0 - dummy sync flag']
  #allocation9 [shape = 's32[]', space=sflag, size = 0x4, offset = 0, fixed_abs, tag = 'sflag constant byte address 0x0 - dummy sync flag']
  %s0 = inlined_call_operand.vmem [shape: f32[8,8,128], index: 0, kind: input, shape index: {}]
  %s1 = inlined_call_operand.vmem [shape: f32[2,8,128], index: 1, kind: input, shape index: {}]
  %s2 = inlined_call_operand.vmem [shape: f32[1,128], index: 2, kind: input, shape index: {}]
  %s3 = inlined_call_operand.vmem [shape: f32[1,1,128], index: 3, kind: input, shape index: {}]
  %s4 = inlined_call_operand.vmem [shape: bf16[128,128], index: 4, kind: input, shape index: {}]
  %s5 = inlined_call_operand.vmem [shape: bf16[1,128,128], index: 5, kind: input, shape index: {}]
  %s6 = inlined_call_operand.vmem [shape: bf16[2,128,128], index: 6, kind: input, shape index: {}]
  %s7 = inlined_call_operand.vmem [shape: f32[8,8,128], index: 7, kind: output, shape index: {0}]
  %s8 = inlined_call_operand.vmem [shape: f32[2,8,128], index: 8, kind: output, shape index: {1}]
  %9 = xla_tuple %s7, %s8
  %s10 = sld [smem:[#allocation0]]
  $region95: #{rnn_forward.1} parent=0
    _
  %s12 = ssub.s32 1, %s10
  %s13 = scalar_select 0, %s12, %s10
  // Predicated region
  $region2: #{rnn_forward.1} parent=0 // pred_check
    _
  $region3: #{rnn_forward.1} parent=0 // pred_check_branch
    %15 = sbr.rel (0) target = $region5
  $region4: #{rnn_forward.1} parent=0 // pred_region
    _
  $region5: #{rnn_forward.1} parent=0 // pred_fallthru
    _
  // Predicated region
  $region6: #{rnn_forward.1} parent=0 // pred_check
    _
  $region7: #{rnn_forward.1} parent=0 // pred_check_branch
    %17 = sbr.rel (0) target = $region9
  $region8: #{rnn_forward.1} parent=0 // pred_region
    _
  $region9: #{rnn_forward.1} parent=0 // pred_fallthru
    _
  // Predicated region
  $region10: #{rnn_forward.1} parent=0 // pred_check
    _
  $region11: #{rnn_forward.1} parent=0 // pred_check_branch
    %19 = sbr.rel (0) target = $region13
  $region12: #{rnn_forward.1} parent=0 // pred_region
    _
  $region13: #{rnn_forward.1} parent=0 // pred_fallthru
    _
  // Predicated region
  $region14: #{rnn_forward.1} parent=0 // pred_check
    _
  $region15: #{rnn_forward.1} parent=0 // pred_check_branch
    %21 = sbr.rel (0) target = $region17
  $region16: #{rnn_forward.1} parent=0 // pred_region
    _
  $region17: #{rnn_forward.1} parent=0 // pred_fallthru
    _
  %p22 = scmp.eq.s32.totalorder 0, 0
  // Predicated region
  $region18: #{rnn_forward.1} parent=0 // pred_check
    %p23 = pneg %p22
  $region19: #{rnn_forward.1} parent=0 // pred_check_branch
    %25 = sbr.rel (%p23) target = $region21
  $region20: #{rnn_forward.1} parent=0 // pred_region
    // Predicated region
    $region22: #{rnn_forward.1} parent=20 // pred_check
      _
    $region23: #{rnn_forward.1} parent=20 // pred_check_branch
      %27 = sbr.rel (0) target = $region25
    $region24: #{rnn_forward.1} parent=20 // pred_region
      loop: start=0, step=1, limit=1
      $region26: #{rnn_forward.1} parent=24 // loop_pre_header
        _
      $region27: #{rnn_forward.1} parent=24 // loop_header
        %s29 = sphi 0, %s33
        %p30 = scmp.ge.s32.totalorder %s29, 1
        %s34 = sphi %s4, %s4
        %s35 = sphi [#allocation2], [#allocation2]
      $region28: #{rnn_forward.1} parent=24 // loop_header_branch
        %32 = sbr.rel (%p30) target = $region32
      $region29: #{rnn_forward.1} parent=24 // loop_body
        %v36 = vld [vmem:[%s34] sm:$0xff]
        %37 = vst [vmem:[%s35] sm:$0xff] %v36
        %v38 = vld [vmem:[%s34 + $0x8] sm:$0xff]
        %39 = vst [vmem:[%s35 + $0x8] sm:$0xff] %v38
        %v40 = vld [vmem:[%s34 + $0x10] sm:$0xff]
        %41 = vst [vmem:[%s35 + $0x10] sm:$0xff] %v40
        %v42 = vld [vmem:[%s34 + $0x18] sm:$0xff]
        %43 = vst [vmem:[%s35 + $0x18] sm:$0xff] %v42
        %v44 = vld [vmem:[%s34 + $0x20] sm:$0xff]
        %45 = vst [vmem:[%s35 + $0x20] sm:$0xff] %v44
        %v46 = vld [vmem:[%s34 + $0x28] sm:$0xff]
        %47 = vst [vmem:[%s35 + $0x28] sm:$0xff] %v46
        %v48 = vld [vmem:[%s34 + $0x30] sm:$0xff]
        %49 = vst [vmem:[%s35 + $0x30] sm:$0xff] %v48
        %v50 = vld [vmem:[%s34 + $0x38] sm:$0xff]
        %51 = vst [vmem:[%s35 + $0x38] sm:$0xff] %v50
      $region30: #{rnn_forward.1} parent=24 // loop_footer
        %s33 = sadd.s32 1, %s29
      $region31: #{rnn_forward.1} parent=24 // loop_footer_branch
        %28 = sbr.rel target = $region27
      $region32: #{rnn_forward.1} parent=24 // loop_exit
        _
    $region25: #{rnn_forward.1} parent=20 // pred_fallthru
      _
    // Predicated region
    $region33: #{rnn_forward.1} parent=20 // pred_check
      _
    $region34: #{rnn_forward.1} parent=20 // pred_check_branch
      %53 = sbr.rel target = $region36
    $region35: #{rnn_forward.1} parent=20 // pred_region
      _
    $region36: #{rnn_forward.1} parent=20 // pred_fallthru
      _
    // Predicated region
    $region37: #{rnn_forward.1} parent=20 // pred_check
      _
    $region38: #{rnn_forward.1} parent=20 // pred_check_branch
      %56 = sbr.rel (0) target = $region40
    $region39: #{rnn_forward.1} parent=20 // pred_region
      %57 = vsyncadd [#allocation6], 1024
    $region40: #{rnn_forward.1} parent=20 // pred_fallthru
      _
    %s58 = scalar_lea.sflag [#allocation6], 1
    // Predicated region
    $region41: #{rnn_forward.1} parent=20 // pred_check
      _
    $region42: #{rnn_forward.1} parent=20 // pred_check_branch
      %60 = sbr.rel (0) target = $region44
    $region43: #{rnn_forward.1} parent=20 // pred_region
      loop: start=0, step=1, limit=1
      $region45: #{rnn_forward.1} parent=43 // loop_pre_header
        _
      $region46: #{rnn_forward.1} parent=43 // loop_header
        %s62 = sphi 0, %s66
        %p63 = scmp.ge.s32.totalorder %s62, 1
        %s67 = sphi %s5, %s5
        %s68 = sphi [#allocation3], [#allocation3]
      $region47: #{rnn_forward.1} parent=43 // loop_header_branch
        %65 = sbr.rel (%p63) target = $region51
      $region48: #{rnn_forward.1} parent=43 // loop_body
        %v69 = vld [vmem:[%s67] sm:$0xff]
        %70 = vst [vmem:[%s68] sm:$0xff] %v69
        %v71 = vld [vmem:[%s67 + $0x8] sm:$0xff]
        %72 = vst [vmem:[%s68 + $0x8] sm:$0xff] %v71
        %v73 = vld [vmem:[%s67 + $0x10] sm:$0xff]
        %74 = vst [vmem:[%s68 + $0x10] sm:$0xff] %v73
        %v75 = vld [vmem:[%s67 + $0x18] sm:$0xff]
        %76 = vst [vmem:[%s68 + $0x18] sm:$0xff] %v75
        %v77 = vld [vmem:[%s67 + $0x20] sm:$0xff]
        %78 = vst [vmem:[%s68 + $0x20] sm:$0xff] %v77
        %v79 = vld [vmem:[%s67 + $0x28] sm:$0xff]
        %80 = vst [vmem:[%s68 + $0x28] sm:$0xff] %v79
        %v81 = vld [vmem:[%s67 + $0x30] sm:$0xff]
        %82 = vst [vmem:[%s68 + $0x30] sm:$0xff] %v81
        %v83 = vld [vmem:[%s67 + $0x38] sm:$0xff]
        %84 = vst [vmem:[%s68 + $0x38] sm:$0xff] %v83
      $region49: #{rnn_forward.1} parent=43 // loop_footer
        %s66 = sadd.s32 1, %s62
      $region50: #{rnn_forward.1} parent=43 // loop_footer_branch
        %61 = sbr.rel target = $region46
      $region51: #{rnn_forward.1} parent=43 // loop_exit
        _
    $region44: #{rnn_forward.1} parent=20 // pred_fallthru
      _
    // Predicated region
    $region52: #{rnn_forward.1} parent=20 // pred_check
      _
    $region53: #{rnn_forward.1} parent=20 // pred_check_branch
      %86 = sbr.rel target = $region55
    $region54: #{rnn_forward.1} parent=20 // pred_region
      _
    $region55: #{rnn_forward.1} parent=20 // pred_fallthru
      _
    // Predicated region
    $region56: #{rnn_forward.1} parent=20 // pred_check
      _
    $region57: #{rnn_forward.1} parent=20 // pred_check_branch
      %89 = sbr.rel (0) target = $region59
    $region58: #{rnn_forward.1} parent=20 // pred_region
      %90 = vsyncadd %s58, 1024
    $region59: #{rnn_forward.1} parent=20 // pred_fallthru
      _
    %s91 = scalar_lea.sflag [#allocation6], 2
    // Predicated region
    $region60: #{rnn_forward.1} parent=20 // pred_check
      _
    $region61: #{rnn_forward.1} parent=20 // pred_check_branch
      %93 = sbr.rel (0) target = $region63
    $region62: #{rnn_forward.1} parent=20 // pred_region
      loop: start=0, step=1, limit=1
      $region64: #{rnn_forward.1} parent=62 // loop_pre_header
        _
      $region65: #{rnn_forward.1} parent=62 // loop_header
        %s95 = sphi 0, %s99
        %p96 = scmp.ge.s32.totalorder %s95, 1
        %s100 = sphi %s6, %s6
        %s101 = sphi [#allocation4], [#allocation4]
      $region66: #{rnn_forward.1} parent=62 // loop_header_branch
        %98 = sbr.rel (%p96) target = $region70
      $region67: #{rnn_forward.1} parent=62 // loop_body
        %v102 = vld [vmem:[%s100] sm:$0xff]
        %103 = vst [vmem:[%s101] sm:$0xff] %v102
        %v104 = vld [vmem:[%s100 + $0x8] sm:$0xff]
        %105 = vst [vmem:[%s101 + $0x8] sm:$0xff] %v104
        %v106 = vld [vmem:[%s100 + $0x10] sm:$0xff]
        %107 = vst [vmem:[%s101 + $0x10] sm:$0xff] %v106
        %v108 = vld [vmem:[%s100 + $0x18] sm:$0xff]
        %109 = vst [vmem:[%s101 + $0x18] sm:$0xff] %v108
        %v110 = vld [vmem:[%s100 + $0x20] sm:$0xff]
        %111 = vst [vmem:[%s101 + $0x20] sm:$0xff] %v110
        %v112 = vld [vmem:[%s100 + $0x28] sm:$0xff]
        %113 = vst [vmem:[%s101 + $0x28] sm:$0xff] %v112
        %v114 = vld [vmem:[%s100 + $0x30] sm:$0xff]
        %115 = vst [vmem:[%s101 + $0x30] sm:$0xff] %v114
        %v116 = vld [vmem:[%s100 + $0x38] sm:$0xff]
        %117 = vst [vmem:[%s101 + $0x38] sm:$0xff] %v116
        %v118 = vld [vmem:[%s100 + $0x40] sm:$0xff]
        %119 = vst [vmem:[%s101 + $0x40] sm:$0xff] %v118
        %v120 = vld [vmem:[%s100 + $0x48] sm:$0xff]
        %121 = vst [vmem:[%s101 + $0x48] sm:$0xff] %v120
        %v122 = vld [vmem:[%s100 + $0x50] sm:$0xff]
        %123 = vst [vmem:[%s101 + $0x50] sm:$0xff] %v122
        %v124 = vld [vmem:[%s100 + $0x58] sm:$0xff]
        %125 = vst [vmem:[%s101 + $0x58] sm:$0xff] %v124
        %v126 = vld [vmem:[%s100 + $0x60] sm:$0xff]
        %127 = vst [vmem:[%s101 + $0x60] sm:$0xff] %v126
        %v128 = vld [vmem:[%s100 + $0x68] sm:$0xff]
        %129 = vst [vmem:[%s101 + $0x68] sm:$0xff] %v128
        %v130 = vld [vmem:[%s100 + $0x70] sm:$0xff]
        %131 = vst [vmem:[%s101 + $0x70] sm:$0xff] %v130
        %v132 = vld [vmem:[%s100 + $0x78] sm:$0xff]
        %133 = vst [vmem:[%s101 + $0x78] sm:$0xff] %v132
      $region68: #{rnn_forward.1} parent=62 // loop_footer
        %s99 = sadd.s32 1, %s95
      $region69: #{rnn_forward.1} parent=62 // loop_footer_branch
        %94 = sbr.rel target = $region65
      $region70: #{rnn_forward.1} parent=62 // loop_exit
        _
    $region63: #{rnn_forward.1} parent=20 // pred_fallthru
      _
    // Predicated region
    $region71: #{rnn_forward.1} parent=20 // pred_check
      _
    $region72: #{rnn_forward.1} parent=20 // pred_check_branch
      %135 = sbr.rel target = $region74
    $region73: #{rnn_forward.1} parent=20 // pred_region
      _
    $region74: #{rnn_forward.1} parent=20 // pred_fallthru
      _
    // Predicated region
    $region75: #{rnn_forward.1} parent=20 // pred_check
      _
    $region76: #{rnn_forward.1} parent=20 // pred_check_branch
      %138 = sbr.rel (0) target = $region78
    $region77: #{rnn_forward.1} parent=20 // pred_region
      %139 = vsyncadd %s91, 2048
    $region78: #{rnn_forward.1} parent=20 // pred_fallthru
      _
    %s140 = smul.u32 4, 16
    %s141 = smul.u32 %s140, 1
    %s142 = sshll.u32 %s141, 4
    %143 = dma.done [#allocation6], %s142
    %s144 = smul.u32 4, 1
    %s145 = smul.u32 %s144, 16
    %s146 = smul.u32 %s145, 1
    %s147 = sshll.u32 %s146, 4
    %148 = dma.done %s58, %s147
    %s149 = smul.u32 4, 2
    %s150 = smul.u32 %s149, 16
    %s151 = smul.u32 %s150, 1
    %s152 = sshll.u32 %s151, 4
    %153 = dma.done %s91, %s152
    %v154 = vld [vmem:[%s1] sm:$0xff]
    %v155 = vld [vmem:[%s1 + $0x8] sm:$0xff]
    %156 = vst [vmem:[%s8] sm:$0xff] %v154
    %157 = vst [vmem:[%s8 + $0x8] sm:$0xff] %v155
  $region21: #{rnn_forward.1} parent=0 // pred_fallthru
    _
  %v158 = vld [vmem:[%s0] sm:$0xff]
  %v159 = vld [vmem:[%s0 + $0x8] sm:$0xff]
  %v160 = vld [vmem:[%s0 + $0x10] sm:$0xff]
  %v161 = vld [vmem:[%s0 + $0x18] sm:$0xff]
  %v162 = vld [vmem:[%s0 + $0x20] sm:$0xff]
  %v163 = vld [vmem:[%s0 + $0x28] sm:$0xff]
  %v164 = vld [vmem:[%s0 + $0x30] sm:$0xff]
  %v165 = vld [vmem:[%s0 + $0x38] sm:$0xff]
  %v166 = vld [vmem:[#allocation2] sm:$0xf]
  %v167 = vld [vmem:[#allocation2 + $0x4] sm:$0xf]
  %v168 = vld [vmem:[#allocation2 + $0x8] sm:$0xf]
  %v169 = vld [vmem:[#allocation2 + $0xc] sm:$0xf]
  %v170 = vld [vmem:[#allocation2 + $0x10] sm:$0xf]
  %v171 = vld [vmem:[#allocation2 + $0x14] sm:$0xf]
  %v172 = vld [vmem:[#allocation2 + $0x18] sm:$0xf]
  %v173 = vld [vmem:[#allocation2 + $0x1c] sm:$0xf]
  %v174 = vld [vmem:[#allocation2 + $0x20] sm:$0xf]
  %v175 = vld [vmem:[#allocation2 + $0x24] sm:$0xf]
  %v176 = vld [vmem:[#allocation2 + $0x28] sm:$0xf]
  %v177 = vld [vmem:[#allocation2 + $0x2c] sm:$0xf]
  %v178 = vld [vmem:[#allocation2 + $0x30] sm:$0xf]
  %v179 = vld [vmem:[#allocation2 + $0x34] sm:$0xf]
  %v180 = vld [vmem:[#allocation2 + $0x38] sm:$0xf]
  %v181 = vld [vmem:[#allocation2 + $0x3c] sm:$0xf]
  %v182 = vld [vmem:[%s2] sm:$0x1]
  %v183 = vpack.c.bf16 %v159, %v158
  %v184 = vpack.c.bf16 %v161, %v160
  %v185 = vpack.c.bf16 %v163, %v162
  %v186 = vpack.c.bf16 %v165, %v164
  %v188 = vperm.slane %v182, 0
  %v206 = vunpack.c.l.b16 %v166
  %v207 = vunpack.c.l.b16 %v167
  %v208 = vunpack.c.l.b16 %v168
  %v209 = vunpack.c.l.b16 %v169
  %v210 = vunpack.c.l.b16 %v170
  %v211 = vunpack.c.l.b16 %v171
  %v212 = vunpack.c.l.b16 %v172
  %v213 = vunpack.c.l.b16 %v173
  %v214 = vunpack.c.l.b16 %v174
  %v215 = vunpack.c.l.b16 %v175
  %v216 = vunpack.c.l.b16 %v176
  %v217 = vunpack.c.l.b16 %v177
  %v218 = vunpack.c.l.b16 %v178
  %v219 = vunpack.c.l.b16 %v179
  %v220 = vunpack.c.l.b16 %v180
  %v221 = vunpack.c.l.b16 %v181
  %v222 = vpack.c.b16 %v207, %v206
  %v223 = vpack.c.b16 %v209, %v208
  %v224 = vpack.c.b16 %v211, %v210
  %v225 = vpack.c.b16 %v213, %v212
  %v226 = vpack.c.b16 %v215, %v214
  %v227 = vpack.c.b16 %v217, %v216
  %v228 = vpack.c.b16 %v219, %v218
  %v229 = vpack.c.b16 %v221, %v220
  %238 = vmatpush.bf16.msra.mxu0 %v229
  %239 = vmatpush.bf16.msra.mxu0 %v228
  %240 = vmatpush.bf16.msra.mxu0 %v227
  %241 = vmatpush.bf16.msra.mxu0 %v226
  %242 = vmatpush.bf16.msra.mxu0 %v225
  %243 = vmatpush.bf16.msra.mxu0 %v224
  %244 = vmatpush.bf16.msra.mxu0 %v223
  %245 = vmatpush.bf16.msra.mxu0 %v222
  %246 = vmatmul.bf16.gmra.mxu0 %v183
  %v247 = vpop.f32.mrf.mxu0
  %v248 = vadd.f32 %v188, %v247
  %v249 = vpop.f32.mrf.mxu0
  %v250 = vadd.f32 %v188, %v249
  %251 = vmatmul.bf16.gmra.mxu0 %v184
  %v252 = vpop.f32.mrf.mxu0
  %v253 = vadd.f32 %v188, %v252
  %v254 = vpop.f32.mrf.mxu0
  %v255 = vadd.f32 %v188, %v254
  %256 = vmatmul.bf16.gmra.mxu0 %v185
  %v257 = vpop.f32.mrf.mxu0
  %v258 = vadd.f32 %v188, %v257
  %v259 = vpop.f32.mrf.mxu0
  %v260 = vadd.f32 %v188, %v259
  %261 = vmatmul.bf16.gmra.mxu0 %v186
  %v262 = vpop.f32.mrf.mxu0
  %v263 = vadd.f32 %v188, %v262
  %v264 = vpop.f32.mrf.mxu0
  %v265 = vadd.f32 %v188, %v264
  %266 = vdwg.mxu0
  %267 = vst [vmem:[#allocation5] sm:$0xff] %v248
  %268 = vst [vmem:[#allocation5 + $0x8] sm:$0xff] %v250
  %269 = vst [vmem:[#allocation5 + $0x10] sm:$0xff] %v253
  %270 = vst [vmem:[#allocation5 + $0x18] sm:$0xff] %v255
  %271 = vst [vmem:[#allocation5 + $0x20] sm:$0xff] %v258
  %272 = vst [vmem:[#allocation5 + $0x28] sm:$0xff] %v260
  %273 = vst [vmem:[#allocation5 + $0x30] sm:$0xff] %v263
  %274 = vst [vmem:[#allocation5 + $0x38] sm:$0xff] %v265
  %v275 = vld [vmem:[#allocation4] sm:$0xf]
  %v276 = vld [vmem:[#allocation4 + $0x4] sm:$0xf]
  %v277 = vld [vmem:[#allocation4 + $0x8] sm:$0xf]
  %v278 = vld [vmem:[#allocation4 + $0xc] sm:$0xf]
  %v279 = vld [vmem:[#allocation4 + $0x10] sm:$0xf]
  %v280 = vld [vmem:[#allocation4 + $0x14] sm:$0xf]
  %v281 = vld [vmem:[#allocation4 + $0x18] sm:$0xf]
  %v282 = vld [vmem:[#allocation4 + $0x1c] sm:$0xf]
  %v283 = vld [vmem:[#allocation4 + $0x20] sm:$0xf]
  %v284 = vld [vmem:[#allocation4 + $0x24] sm:$0xf]
  %v285 = vld [vmem:[#allocation4 + $0x28] sm:$0xf]
  %v286 = vld [vmem:[#allocation4 + $0x2c] sm:$0xf]
  %v287 = vld [vmem:[#allocation4 + $0x30] sm:$0xf]
  %v288 = vld [vmem:[#allocation4 + $0x34] sm:$0xf]
  %v289 = vld [vmem:[#allocation4 + $0x38] sm:$0xf]
  %v290 = vld [vmem:[#allocation4 + $0x3c] sm:$0xf]
  %v291 = vld [vmem:[%s8] sm:$0xff]
  %v292 = vpack.c.bf16 %v291, %v291
  %v293 = vld [vmem:[#allocation5] sm:$0xff]
  %v310 = vunpack.c.l.b16 %v275
  %v311 = vunpack.c.l.b16 %v276
  %v312 = vunpack.c.l.b16 %v277
  %v313 = vunpack.c.l.b16 %v278
  %v314 = vunpack.c.l.b16 %v279
  %v315 = vunpack.c.l.b16 %v280
  %v316 = vunpack.c.l.b16 %v281
  %v317 = vunpack.c.l.b16 %v282
  %v318 = vunpack.c.l.b16 %v283
  %v319 = vunpack.c.l.b16 %v284
  %v320 = vunpack.c.l.b16 %v285
  %v321 = vunpack.c.l.b16 %v286
  %v322 = vunpack.c.l.b16 %v287
  %v323 = vunpack.c.l.b16 %v288
  %v324 = vunpack.c.l.b16 %v289
  %v325 = vunpack.c.l.b16 %v290
  %v326 = vpack.c.b16 %v311, %v310
  %v327 = vpack.c.b16 %v313, %v312
  %v328 = vpack.c.b16 %v315, %v314
  %v329 = vpack.c.b16 %v317, %v316
  %v330 = vpack.c.b16 %v319, %v318
  %v331 = vpack.c.b16 %v321, %v320
  %v332 = vpack.c.b16 %v323, %v322
  %v333 = vpack.c.b16 %v325, %v324
  %342 = vmatpush.bf16.msra.mxu0 %v333
  %343 = vmatpush.bf16.msra.mxu0 %v332
  %344 = vmatpush.bf16.msra.mxu0 %v331
  %345 = vmatpush.bf16.msra.mxu0 %v330
  %346 = vmatpush.bf16.msra.mxu0 %v329
  %347 = vmatpush.bf16.msra.mxu0 %v328
  %348 = vmatpush.bf16.msra.mxu0 %v327
  %349 = vmatpush.bf16.msra.mxu0 %v326
  %350 = vmatmul.bf16.gmra.mxu0 %v292
  %v351 = vpop.f32.mrf.mxu0
  %v352 = vadd.f32 %v293, %v351
  %v353 = vpop.f32.mrf.mxu0
  %354 = vdwg.mxu0
  %v355 = vtanh.pop %v352
  %356 = vst [vmem:[#allocation5] sm:$0xff] %v355
  %v357 = vpack.c.bf16 %v355, %v355
  %s358 = scalar_lea.vmem [#allocation5], 8
  %v359 = vld [vmem:[%s358] sm:$0xff]
  %360 = vmatpush.bf16.msra.mxu0 %v333
  %361 = vmatpush.bf16.msra.mxu0 %v332
  %362 = vmatpush.bf16.msra.mxu0 %v331
  %363 = vmatpush.bf16.msra.mxu0 %v330
  %364 = vmatpush.bf16.msra.mxu0 %v329
  %365 = vmatpush.bf16.msra.mxu0 %v328
  %366 = vmatpush.bf16.msra.mxu0 %v327
  %367 = vmatpush.bf16.msra.mxu0 %v326
  %368 = vmatmul.bf16.gmra.mxu0 %v357
  %v369 = vpop.f32.mrf.mxu0
  %v370 = vadd.f32 %v359, %v369
  %v371 = vpop.f32.mrf.mxu0
  %372 = vdwg.mxu0
  %v373 = vtanh.pop %v370
  %374 = vst [vmem:[%s358] sm:$0xff] %v373
  %v375 = vpack.c.bf16 %v373, %v373
  %s376 = scalar_lea.vmem [#allocation5], 16
  %v377 = vld [vmem:[%s376] sm:$0xff]
  %378 = vmatpush.bf16.msra.mxu0 %v333
  %379 = vmatpush.bf16.msra.mxu0 %v332
  %380 = vmatpush.bf16.msra.mxu0 %v331
  %381 = vmatpush.bf16.msra.mxu0 %v330
  %382 = vmatpush.bf16.msra.mxu0 %v329
  %383 = vmatpush.bf16.msra.mxu0 %v328
  %384 = vmatpush.bf16.msra.mxu0 %v327
  %385 = vmatpush.bf16.msra.mxu0 %v326
  %386 = vmatmul.bf16.gmra.mxu0 %v375
  %v387 = vpop.f32.mrf.mxu0
  %v388 = vadd.f32 %v377, %v387
  %v389 = vpop.f32.mrf.mxu0
  %390 = vdwg.mxu0
  %v391 = vtanh.pop %v388
  %392 = vst [vmem:[%s376] sm:$0xff] %v391
  %v393 = vpack.c.bf16 %v391, %v391
  %s394 = scalar_lea.vmem [#allocation5], 24
  %v395 = vld [vmem:[%s394] sm:$0xff]
  %396 = vmatpush.bf16.msra.mxu0 %v333
  %397 = vmatpush.bf16.msra.mxu0 %v332
  %398 = vmatpush.bf16.msra.mxu0 %v331
  %399 = vmatpush.bf16.msra.mxu0 %v330
  %400 = vmatpush.bf16.msra.mxu0 %v329
  %401 = vmatpush.bf16.msra.mxu0 %v328
  %402 = vmatpush.bf16.msra.mxu0 %v327
  %403 = vmatpush.bf16.msra.mxu0 %v326
  %404 = vmatmul.bf16.gmra.mxu0 %v393
  %v405 = vpop.f32.mrf.mxu0
  %v406 = vadd.f32 %v395, %v405
  %v407 = vpop.f32.mrf.mxu0
  %408 = vdwg.mxu0
  %v409 = vtanh.pop %v406
  %410 = vst [vmem:[%s394] sm:$0xff] %v409
  %v411 = vpack.c.bf16 %v409, %v409
  %s412 = scalar_lea.vmem [#allocation5], 32
  %v413 = vld [vmem:[%s412] sm:$0xff]
  %414 = vmatpush.bf16.msra.mxu0 %v333
  %415 = vmatpush.bf16.msra.mxu0 %v332
  %416 = vmatpush.bf16.msra.mxu0 %v331
  %417 = vmatpush.bf16.msra.mxu0 %v330
  %418 = vmatpush.bf16.msra.mxu0 %v329
  %419 = vmatpush.bf16.msra.mxu0 %v328
  %420 = vmatpush.bf16.msra.mxu0 %v327
  %421 = vmatpush.bf16.msra.mxu0 %v326
  %422 = vmatmul.bf16.gmra.mxu0 %v411
  %v423 = vpop.f32.mrf.mxu0
  %v424 = vadd.f32 %v413, %v423
  %v425 = vpop.f32.mrf.mxu0
  %426 = vdwg.mxu0
  %v427 = vtanh.pop %v424
  %428 = vst [vmem:[%s412] sm:$0xff] %v427
  %v429 = vpack.c.bf16 %v427, %v427
  %s430 = scalar_lea.vmem [#allocation5], 40
  %v431 = vld [vmem:[%s430] sm:$0xff]
  %432 = vmatpush.bf16.msra.mxu0 %v333
  %433 = vmatpush.bf16.msra.mxu0 %v332
  %434 = vmatpush.bf16.msra.mxu0 %v331
  %435 = vmatpush.bf16.msra.mxu0 %v330
  %436 = vmatpush.bf16.msra.mxu0 %v329
  %437 = vmatpush.bf16.msra.mxu0 %v328
  %438 = vmatpush.bf16.msra.mxu0 %v327
  %439 = vmatpush.bf16.msra.mxu0 %v326
  %440 = vmatmul.bf16.gmra.mxu0 %v429
  %v441 = vpop.f32.mrf.mxu0
  %v442 = vadd.f32 %v431, %v441
  %v443 = vpop.f32.mrf.mxu0
  %444 = vdwg.mxu0
  %v445 = vtanh.pop %v442
  %446 = vst [vmem:[%s430] sm:$0xff] %v445
  %v447 = vpack.c.bf16 %v445, %v445
  %s448 = scalar_lea.vmem [#allocation5], 48
  %v449 = vld [vmem:[%s448] sm:$0xff]
  %450 = vmatpush.bf16.msra.mxu0 %v333
  %451 = vmatpush.bf16.msra.mxu0 %v332
  %452 = vmatpush.bf16.msra.mxu0 %v331
  %453 = vmatpush.bf16.msra.mxu0 %v330
  %454 = vmatpush.bf16.msra.mxu0 %v329
  %455 = vmatpush.bf16.msra.mxu0 %v328
  %456 = vmatpush.bf16.msra.mxu0 %v327
  %457 = vmatpush.bf16.msra.mxu0 %v326
  %458 = vmatmul.bf16.gmra.mxu0 %v447
  %v459 = vpop.f32.mrf.mxu0
  %v460 = vadd.f32 %v449, %v459
  %v461 = vpop.f32.mrf.mxu0
  %462 = vdwg.mxu0
  %v463 = vtanh.pop %v460
  %464 = vst [vmem:[%s448] sm:$0xff] %v463
  %v465 = vpack.c.bf16 %v463, %v463
  %s466 = scalar_lea.vmem [#allocation5], 56
  %v467 = vld [vmem:[%s466] sm:$0xff]
  %468 = vmatpush.bf16.msra.mxu0 %v333
  %469 = vmatpush.bf16.msra.mxu0 %v332
  %470 = vmatpush.bf16.msra.mxu0 %v331
  %471 = vmatpush.bf16.msra.mxu0 %v330
  %472 = vmatpush.bf16.msra.mxu0 %v329
  %473 = vmatpush.bf16.msra.mxu0 %v328
  %474 = vmatpush.bf16.msra.mxu0 %v327
  %475 = vmatpush.bf16.msra.mxu0 %v326
  %476 = vmatmul.bf16.gmra.mxu0 %v465
  %v477 = vpop.f32.mrf.mxu0
  %v478 = vadd.f32 %v467, %v477
  %v479 = vpop.f32.mrf.mxu0
  %480 = vdwg.mxu0
  %v481 = vtanh.pop %v478
  %482 = vst [vmem:[%s466] sm:$0xff] %v481
  %483 = vst [vmem:[%s8] sm:$0xff] %v481
  %v484 = vld [vmem:[#allocation5] sm:$0xff]
  %v485 = vld [vmem:[#allocation5 + $0x8] sm:$0xff]
  %v486 = vld [vmem:[#allocation5 + $0x10] sm:$0xff]
  %v487 = vld [vmem:[#allocation5 + $0x18] sm:$0xff]
  %v488 = vld [vmem:[#allocation5 + $0x20] sm:$0xff]
  %v489 = vld [vmem:[#allocation5 + $0x28] sm:$0xff]
  %v490 = vld [vmem:[#allocation5 + $0x30] sm:$0xff]
  %v491 = vld [vmem:[#allocation5 + $0x38] sm:$0xff]
  %v492 = vld [vmem:[#allocation3] sm:$0xf]
  %v493 = vld [vmem:[#allocation3 + $0x4] sm:$0xf]
  %v494 = vld [vmem:[#allocation3 + $0x8] sm:$0xf]
  %v495 = vld [vmem:[#allocation3 + $0xc] sm:$0xf]
  %v496 = vld [vmem:[#allocation3 + $0x10] sm:$0xf]
  %v497 = vld [vmem:[#allocation3 + $0x14] sm:$0xf]
  %v498 = vld [vmem:[#allocation3 + $0x18] sm:$0xf]
  %v499 = vld [vmem:[#allocation3 + $0x1c] sm:$0xf]
  %v500 = vld [vmem:[#allocation3 + $0x20] sm:$0xf]
  %v501 = vld [vmem:[#allocation3 + $0x24] sm:$0xf]
  %v502 = vld [vmem:[#allocation3 + $0x28] sm:$0xf]
  %v503 = vld [vmem:[#allocation3 + $0x2c] sm:$0xf]
  %v504 = vld [vmem:[#allocation3 + $0x30] sm:$0xf]
  %v505 = vld [vmem:[#allocation3 + $0x34] sm:$0xf]
  %v506 = vld [vmem:[#allocation3 + $0x38] sm:$0xf]
  %v507 = vld [vmem:[#allocation3 + $0x3c] sm:$0xf]
  %v508 = vld [vmem:[%s3] sm:$0x1]
  %v509 = vpack.c.bf16 %v485, %v484
  %v510 = vpack.c.bf16 %v487, %v486
  %v511 = vpack.c.bf16 %v489, %v488
  %v512 = vpack.c.bf16 %v491, %v490
  %v514 = vperm.slane %v508, 0
  %v532 = vunpack.c.l.b16 %v492
  %v533 = vunpack.c.l.b16 %v493
  %v534 = vunpack.c.l.b16 %v494
  %v535 = vunpack.c.l.b16 %v495
  %v536 = vunpack.c.l.b16 %v496
  %v537 = vunpack.c.l.b16 %v497
  %v538 = vunpack.c.l.b16 %v498
  %v539 = vunpack.c.l.b16 %v499
  %v540 = vunpack.c.l.b16 %v500
  %v541 = vunpack.c.l.b16 %v501
  %v542 = vunpack.c.l.b16 %v502
  %v543 = vunpack.c.l.b16 %v503
  %v544 = vunpack.c.l.b16 %v504
  %v545 = vunpack.c.l.b16 %v505
  %v546 = vunpack.c.l.b16 %v506
  %v547 = vunpack.c.l.b16 %v507
  %v548 = vpack.c.b16 %v533, %v532
  %v549 = vpack.c.b16 %v535, %v534
  %v550 = vpack.c.b16 %v537, %v536
  %v551 = vpack.c.b16 %v539, %v538
  %v552 = vpack.c.b16 %v541, %v540
  %v553 = vpack.c.b16 %v543, %v542
  %v554 = vpack.c.b16 %v545, %v544
  %v555 = vpack.c.b16 %v547, %v546
  %564 = vmatpush.bf16.msra.mxu0 %v555
  %565 = vmatpush.bf16.msra.mxu0 %v554
  %566 = vmatpush.bf16.msra.mxu0 %v553
  %567 = vmatpush.bf16.msra.mxu0 %v552
  %568 = vmatpush.bf16.msra.mxu0 %v551
  %569 = vmatpush.bf16.msra.mxu0 %v550
  %570 = vmatpush.bf16.msra.mxu0 %v549
  %571 = vmatpush.bf16.msra.mxu0 %v548
  %572 = vmatmul.bf16.gmra.mxu0 %v509
  %v573 = vpop.f32.mrf.mxu0
  %v574 = vadd.f32 %v514, %v573
  %v575 = vpop.f32.mrf.mxu0
  %v576 = vadd.f32 %v514, %v575
  %577 = vmatmul.bf16.gmra.mxu0 %v510
  %v578 = vpop.f32.mrf.mxu0
  %v579 = vadd.f32 %v514, %v578
  %v580 = vpop.f32.mrf.mxu0
  %v581 = vadd.f32 %v514, %v580
  %582 = vmatmul.bf16.gmra.mxu0 %v511
  %v583 = vpop.f32.mrf.mxu0
  %v584 = vadd.f32 %v514, %v583
  %v585 = vpop.f32.mrf.mxu0
  %v586 = vadd.f32 %v514, %v585
  %587 = vmatmul.bf16.gmra.mxu0 %v512
  %v588 = vpop.f32.mrf.mxu0
  %v589 = vadd.f32 %v514, %v588
  %v590 = vpop.f32.mrf.mxu0
  %v591 = vadd.f32 %v514, %v590
  %592 = vdwg.mxu0
  %593 = vst [vmem:[#allocation5] sm:$0xff] %v574
  %594 = vst [vmem:[#allocation5 + $0x8] sm:$0xff] %v576
  %595 = vst [vmem:[#allocation5 + $0x10] sm:$0xff] %v579
  %596 = vst [vmem:[#allocation5 + $0x18] sm:$0xff] %v581
  %597 = vst [vmem:[#allocation5 + $0x20] sm:$0xff] %v584
  %598 = vst [vmem:[#allocation5 + $0x28] sm:$0xff] %v586
  %599 = vst [vmem:[#allocation5 + $0x30] sm:$0xff] %v589
  %600 = vst [vmem:[#allocation5 + $0x38] sm:$0xff] %v591
  %s601 = scalar_lea.vmem [#allocation4], 64
  %v602 = vld [vmem:[%s601] sm:$0xf]
  %v603 = vld [vmem:[%s601 + $0x4] sm:$0xf]
  %v604 = vld [vmem:[%s601 + $0x8] sm:$0xf]
  %v605 = vld [vmem:[%s601 + $0xc] sm:$0xf]
  %v606 = vld [vmem:[%s601 + $0x10] sm:$0xf]
  %v607 = vld [vmem:[%s601 + $0x14] sm:$0xf]
  %v608 = vld [vmem:[%s601 + $0x18] sm:$0xf]
  %v609 = vld [vmem:[%s601 + $0x1c] sm:$0xf]
  %v610 = vld [vmem:[%s601 + $0x20] sm:$0xf]
  %v611 = vld [vmem:[%s601 + $0x24] sm:$0xf]
  %v612 = vld [vmem:[%s601 + $0x28] sm:$0xf]
  %v613 = vld [vmem:[%s601 + $0x2c] sm:$0xf]
  %v614 = vld [vmem:[%s601 + $0x30] sm:$0xf]
  %v615 = vld [vmem:[%s601 + $0x34] sm:$0xf]
  %v616 = vld [vmem:[%s601 + $0x38] sm:$0xf]
  %v617 = vld [vmem:[%s601 + $0x3c] sm:$0xf]
  %s618 = scalar_lea.vmem %s8, 8
  %v619 = vld [vmem:[%s618] sm:$0xff]
  %v620 = vpack.c.bf16 %v619, %v619
  %v621 = vld [vmem:[#allocation5] sm:$0xff]
  %v638 = vunpack.c.l.b16 %v602
  %v639 = vunpack.c.l.b16 %v603
  %v640 = vunpack.c.l.b16 %v604
  %v641 = vunpack.c.l.b16 %v605
  %v642 = vunpack.c.l.b16 %v606
  %v643 = vunpack.c.l.b16 %v607
  %v644 = vunpack.c.l.b16 %v608
  %v645 = vunpack.c.l.b16 %v609
  %v646 = vunpack.c.l.b16 %v610
  %v647 = vunpack.c.l.b16 %v611
  %v648 = vunpack.c.l.b16 %v612
  %v649 = vunpack.c.l.b16 %v613
  %v650 = vunpack.c.l.b16 %v614
  %v651 = vunpack.c.l.b16 %v615
  %v652 = vunpack.c.l.b16 %v616
  %v653 = vunpack.c.l.b16 %v617
  %v654 = vpack.c.b16 %v639, %v638
  %v655 = vpack.c.b16 %v641, %v640
  %v656 = vpack.c.b16 %v643, %v642
  %v657 = vpack.c.b16 %v645, %v644
  %v658 = vpack.c.b16 %v647, %v646
  %v659 = vpack.c.b16 %v649, %v648
  %v660 = vpack.c.b16 %v651, %v650
  %v661 = vpack.c.b16 %v653, %v652
  %670 = vmatpush.bf16.msra.mxu0 %v661
  %671 = vmatpush.bf16.msra.mxu0 %v660
  %672 = vmatpush.bf16.msra.mxu0 %v659
  %673 = vmatpush.bf16.msra.mxu0 %v658
  %674 = vmatpush.bf16.msra.mxu0 %v657
  %675 = vmatpush.bf16.msra.mxu0 %v656
  %676 = vmatpush.bf16.msra.mxu0 %v655
  %677 = vmatpush.bf16.msra.mxu0 %v654
  %678 = vmatmul.bf16.gmra.mxu0 %v620
  %v679 = vpop.f32.mrf.mxu0
  %v680 = vadd.f32 %v621, %v679
  %v681 = vpop.f32.mrf.mxu0
  %682 = vdwg.mxu0
  %v683 = vtanh.pop %v680
  %684 = vst [vmem:[%s7] sm:$0xff] %v683
  %v685 = vpack.c.bf16 %v683, %v683
  %v686 = vld [vmem:[%s358] sm:$0xff]
  %687 = vmatpush.bf16.msra.mxu0 %v661
  %688 = vmatpush.bf16.msra.mxu0 %v660
  %689 = vmatpush.bf16.msra.mxu0 %v659
  %690 = vmatpush.bf16.msra.mxu0 %v658
  %691 = vmatpush.bf16.msra.mxu0 %v657
  %692 = vmatpush.bf16.msra.mxu0 %v656
  %693 = vmatpush.bf16.msra.mxu0 %v655
  %694 = vmatpush.bf16.msra.mxu0 %v654
  %695 = vmatmul.bf16.gmra.mxu0 %v685
  %v696 = vpop.f32.mrf.mxu0
  %v697 = vadd.f32 %v686, %v696
  %v698 = vpop.f32.mrf.mxu0
  %699 = vdwg.mxu0
  %v700 = vtanh.pop %v697
  %s701 = scalar_lea.vmem %s7, 8
  %702 = vst [vmem:[%s701] sm:$0xff] %v700
  %v703 = vpack.c.bf16 %v700, %v700
  %v704 = vld [vmem:[%s376] sm:$0xff]
  %705 = vmatpush.bf16.msra.mxu0 %v661
  %706 = vmatpush.bf16.msra.mxu0 %v660
  %707 = vmatpush.bf16.msra.mxu0 %v659
  %708 = vmatpush.bf16.msra.mxu0 %v658
  %709 = vmatpush.bf16.msra.mxu0 %v657
  %710 = vmatpush.bf16.msra.mxu0 %v656
  %711 = vmatpush.bf16.msra.mxu0 %v655
  %712 = vmatpush.bf16.msra.mxu0 %v654
  %713 = vmatmul.bf16.gmra.mxu0 %v703
  %v714 = vpop.f32.mrf.mxu0
  %v715 = vadd.f32 %v704, %v714
  %v716 = vpop.f32.mrf.mxu0
  %717 = vdwg.mxu0
  %v718 = vtanh.pop %v715
  %s719 = scalar_lea.vmem %s7, 16
  %720 = vst [vmem:[%s719] sm:$0xff] %v718
  %v721 = vpack.c.bf16 %v718, %v718
  %v722 = vld [vmem:[%s394] sm:$0xff]
  %723 = vmatpush.bf16.msra.mxu0 %v661
  %724 = vmatpush.bf16.msra.mxu0 %v660
  %725 = vmatpush.bf16.msra.mxu0 %v659
  %726 = vmatpush.bf16.msra.mxu0 %v658
  %727 = vmatpush.bf16.msra.mxu0 %v657
  %728 = vmatpush.bf16.msra.mxu0 %v656
  %729 = vmatpush.bf16.msra.mxu0 %v655
  %730 = vmatpush.bf16.msra.mxu0 %v654
  %731 = vmatmul.bf16.gmra.mxu0 %v721
  %v732 = vpop.f32.mrf.mxu0
  %v733 = vadd.f32 %v722, %v732
  %v734 = vpop.f32.mrf.mxu0
  %735 = vdwg.mxu0
  %v736 = vtanh.pop %v733
  %s737 = scalar_lea.vmem %s7, 24
  %738 = vst [vmem:[%s737] sm:$0xff] %v736
  %v739 = vpack.c.bf16 %v736, %v736
  %v740 = vld [vmem:[%s412] sm:$0xff]
  %741 = vmatpush.bf16.msra.mxu0 %v661
  %742 = vmatpush.bf16.msra.mxu0 %v660
  %743 = vmatpush.bf16.msra.mxu0 %v659
  %744 = vmatpush.bf16.msra.mxu0 %v658
  %745 = vmatpush.bf16.msra.mxu0 %v657
  %746 = vmatpush.bf16.msra.mxu0 %v656
  %747 = vmatpush.bf16.msra.mxu0 %v655
  %748 = vmatpush.bf16.msra.mxu0 %v654
  %749 = vmatmul.bf16.gmra.mxu0 %v739
  %v750 = vpop.f32.mrf.mxu0
  %v751 = vadd.f32 %v740, %v750
  %v752 = vpop.f32.mrf.mxu0
  %753 = vdwg.mxu0
  %v754 = vtanh.pop %v751
  %s755 = scalar_lea.vmem %s7, 32
  %756 = vst [vmem:[%s755] sm:$0xff] %v754
  %v757 = vpack.c.bf16 %v754, %v754
  %v758 = vld [vmem:[%s430] sm:$0xff]
  %759 = vmatpush.bf16.msra.mxu0 %v661
  %760 = vmatpush.bf16.msra.mxu0 %v660
  %761 = vmatpush.bf16.msra.mxu0 %v659
  %762 = vmatpush.bf16.msra.mxu0 %v658
  %763 = vmatpush.bf16.msra.mxu0 %v657
  %764 = vmatpush.bf16.msra.mxu0 %v656
  %765 = vmatpush.bf16.msra.mxu0 %v655
  %766 = vmatpush.bf16.msra.mxu0 %v654
  %767 = vmatmul.bf16.gmra.mxu0 %v757
  %v768 = vpop.f32.mrf.mxu0
  %v769 = vadd.f32 %v758, %v768
  %v770 = vpop.f32.mrf.mxu0
  %771 = vdwg.mxu0
  %v772 = vtanh.pop %v769
  %s773 = scalar_lea.vmem %s7, 40
  %774 = vst [vmem:[%s773] sm:$0xff] %v772
  %v775 = vpack.c.bf16 %v772, %v772
  %v776 = vld [vmem:[%s448] sm:$0xff]
  %777 = vmatpush.bf16.msra.mxu0 %v661
  %778 = vmatpush.bf16.msra.mxu0 %v660
  %779 = vmatpush.bf16.msra.mxu0 %v659
  %780 = vmatpush.bf16.msra.mxu0 %v658
  %781 = vmatpush.bf16.msra.mxu0 %v657
  %782 = vmatpush.bf16.msra.mxu0 %v656
  %783 = vmatpush.bf16.msra.mxu0 %v655
  %784 = vmatpush.bf16.msra.mxu0 %v654
  %785 = vmatmul.bf16.gmra.mxu0 %v775
  %v786 = vpop.f32.mrf.mxu0
  %v787 = vadd.f32 %v776, %v786
  %v788 = vpop.f32.mrf.mxu0
  %789 = vdwg.mxu0
  %v790 = vtanh.pop %v787
  %s791 = scalar_lea.vmem %s7, 48
  %792 = vst [vmem:[%s791] sm:$0xff] %v790
  %v793 = vpack.c.bf16 %v790, %v790
  %v794 = vld [vmem:[%s466] sm:$0xff]
  %795 = vmatpush.bf16.msra.mxu0 %v661
  %796 = vmatpush.bf16.msra.mxu0 %v660
  %797 = vmatpush.bf16.msra.mxu0 %v659
  %798 = vmatpush.bf16.msra.mxu0 %v658
  %799 = vmatpush.bf16.msra.mxu0 %v657
  %800 = vmatpush.bf16.msra.mxu0 %v656
  %801 = vmatpush.bf16.msra.mxu0 %v655
  %802 = vmatpush.bf16.msra.mxu0 %v654
  %803 = vmatmul.bf16.gmra.mxu0 %v793
  %v804 = vpop.f32.mrf.mxu0
  %v805 = vadd.f32 %v794, %v804
  %v806 = vpop.f32.mrf.mxu0
  %807 = vdwg.mxu0
  %v808 = vtanh.pop %v805
  %s809 = scalar_lea.vmem %s7, 56
  %810 = vst [vmem:[%s809] sm:$0xff] %v808
  %811 = vst [vmem:[%s618] sm:$0xff] %v808
  // Predicated region
  $region79: #{rnn_forward.1} parent=0 // pred_check
    _
  $region80: #{rnn_forward.1} parent=0 // pred_check_branch
    %813 = sbr.rel (0) target = $region82
  $region81: #{rnn_forward.1} parent=0 // pred_region
    _
  $region82: #{rnn_forward.1} parent=0 // pred_fallthru
    _
  // Predicated region
  $region83: #{rnn_forward.1} parent=0 // pred_check
    _
  $region84: #{rnn_forward.1} parent=0 // pred_check_branch
    %815 = sbr.rel (0) target = $region86
  $region85: #{rnn_forward.1} parent=0 // pred_region
    _
  $region86: #{rnn_forward.1} parent=0 // pred_fallthru
    _
  // Predicated region
  $region87: #{rnn_forward.1} parent=0 // pred_check
    _
  $region88: #{rnn_forward.1} parent=0 // pred_check_branch
    %817 = sbr.rel (0) target = $region90
  $region89: #{rnn_forward.1} parent=0 // pred_region
    _
  $region90: #{rnn_forward.1} parent=0 // pred_fallthru
    _
  // Predicated region
  $region91: #{rnn_forward.1} parent=0 // pred_check
    _
  $region92: #{rnn_forward.1} parent=0 // pred_check_branch
    %819 = sbr.rel (0) target = $region94
  $region93: #{rnn_forward.1} parent=0 // pred_region
    _
  $region94: #{rnn_forward.1} parent=0 // pred_fallthru
    _
  %820 = vsyncmov [#allocation6]
  %s821 = vpop.sfrf %820
  %p822 = scmp.eq.s32.totalorder %s821, 0
  %p823 = pneg %p822
  %825 = shalt.err (%p823)
  %s826 = scalar_lea.sflag [#allocation6], 1
  %827 = vsyncmov %s826
  %s828 = vpop.sfrf %827
  %p829 = scmp.eq.s32.totalorder %s828, 0
  %p830 = pneg %p829
  %832 = shalt.err (%p830)
  %s833 = scalar_lea.sflag [#allocation6], 2
  %834 = vsyncmov %s833
  %s835 = vpop.sfrf %834
  %p836 = scmp.eq.s32.totalorder %s835, 0
  %p837 = pneg %p836
  %839 = shalt.err (%p837)

</llo_original>
